<compile_context>
chip_gen: v7x
topology: tpu7x:2x2x1
jax: 0.10.0
libtpu: 0.0.40
codegen_flags: <defaults>
</compile_context>

<pallas_src>
import functools
import math

import jax
import jax.numpy as jnp
from jax.experimental import pallas as pl
from jax.experimental.pallas import tpu as pltpu

_HIGH = jax.lax.Precision.HIGHEST


# --------------------------------------------------------------------------
# small helpers (plain JAX, tiny tensors)
# --------------------------------------------------------------------------
def _round_up(n: int, m: int) -> int:
    return ((n + m - 1) // m) * m


def _pool_bins(n, s):
    """PyTorch adaptive-pool bin [start, end) pairs along one axis."""
    return [(int(math.floor(i * n / s)), int(math.ceil((i + 1) * n / s)))
            for i in range(s)]


def _seg_boundaries(n, sizes):
    bs = set()
    for s in sizes:
        for lo, hi in _pool_bins(n, s):
            bs.add(lo)
            bs.add(hi)
    return sorted(bs)


def _adaptive_max_pools(x, sizes):
    """All AdaptiveMaxPool2d((s, s))(x) outputs while streaming x from HBM once.

    Rows, then cols, are max-reduced onto the segments induced by the union of
    every stage's bin boundaries; since each adaptive bin is an exact union of
    consecutive segments, each (s, s) pool is assembled from the tiny segment
    grid with negligible extra work.
    """
    B, C, H, W = x.shape
    rb = _seg_boundaries(H, sizes)
    cb = _seg_boundaries(W, sizes)
    # (B, C, n_rseg, W): segments partition [0, H) -> exactly one read of x.
    rmax = jnp.stack([jnp.max(x[:, :, a:b, :], axis=2)
                      for a, b in zip(rb[:-1], rb[1:])], axis=2)
    # (B, C, n_rseg, n_cseg): reduction over the already-small row-reduced map.
    seg = jnp.stack([jnp.max(rmax[:, :, :, a:b], axis=3)
                     for a, b in zip(cb[:-1], cb[1:])], axis=3)
    pools = []
    for s in sizes:
        rows = []
        for lo, hi in _pool_bins(H, s):
            rows.append(jnp.max(seg[:, :, rb.index(lo):rb.index(hi), :], axis=2))
        r = jnp.stack(rows, axis=2)                                    # (B, C, s, n_cseg)
        cols = []
        for lo, hi in _pool_bins(W, s):
            cols.append(jnp.max(r[:, :, :, cb.index(lo):cb.index(hi)], axis=3))
        pools.append(jnp.stack(cols, axis=3))                          # (B, C, s, s)
    return pools


def _interp_matrix(out_size, in_size):
    """(out_size, in_size) bilinear interpolation matrix, align_corners=False."""
    d = jnp.arange(out_size, dtype=jnp.float32)
    src = jnp.clip((d + 0.5) * (in_size / out_size) - 0.5, 0.0, in_size - 1)
    i0 = jnp.floor(src).astype(jnp.int32)
    i1 = jnp.minimum(i0 + 1, in_size - 1)
    w1 = src - i0.astype(jnp.float32)
    w0 = 1.0 - w1
    return (jax.nn.one_hot(i0, in_size) * w0[:, None] +
            jax.nn.one_hot(i1, in_size) * w1[:, None])


def _vmem_limit_bytes():
    """Generation-aware scoped-VMEM target: ~3/4 of physical capacity
    (v5e/v6e 128 MiB -> 96 MiB, v7x 64 MiB per-TC -> 48 MiB)."""
    phys = 64 * 1024 * 1024                      # conservative fallback (v7x per-TC)
    try:
        cap = getattr(pltpu.get_tpu_info(), "vmem_capacity_bytes", None)
        if cap:
            phys = int(cap)
    except Exception:
        pass
    return int(min(phys * 3 // 4, 112 * 1024 * 1024))


def _pick_tile(hw, c_in, c_out, s_tot, itemsize, batch, budget_bytes):
    """Lane-tile size: multiple of 128, footprint-model under the VMEM budget,
    divisor-aware (minimize padding, then maximize T)."""
    hw128 = _round_up(hw, 128)
    # streamed, double-buffered bytes per lane: x tile + out tile + w_int tile
    per_lane = 2 * (c_in + c_out + s_tot) * itemsize
    # resident operands (w_last, q) -- conservatively count two buffers each
    fixed = 2 * (c_out * c_in + c_out * s_tot) * itemsize
    t_cap = max(128, ((budget_bytes - fixed) // per_lane) // 128 * 128)
    t_cap = min(t_cap, 2048, hw128)              # diminishing returns past ~2k lanes
    if batch == 1 and hw > 128:
        # keep >= 2 inner grid steps so both v7x TensorCores get work at B==1
        t_cap = min(t_cap, max(128, _round_up((hw + 1) // 2, 128)))
    best_t, best_key = 128, None
    for t in range(128, t_cap + 1, 128):
        key = (_round_up(hw, t), -t)             # (padded size, prefer larger tile)
        if best_key is None or key < best_key:
            best_key, best_t = key, t
    return best_t


# --------------------------------------------------------------------------
# Pallas kernel: fused bottleneck 1x1 conv + all upsampled priors + bias + ReLU
# --------------------------------------------------------------------------
def _psp_bottleneck_kernel(x_ref, wlast_ref, wint_ref, q_ref, o_ref, *, precision):
    # x_ref:    (C, T)     activation tile, input dtype (never up-cast)
    # wlast_ref:(Cout, C)  bottleneck block for the identity branch (input dtype)
    # wint_ref: (S, T)     per-pixel interpolation weights (+ ones row for bias)
    # q_ref:    (Cout, S)  merged pooled contributions (+ bias column)
    main = jnp.dot(wlast_ref[...], x_ref[...],
                   preferred_element_type=jnp.float32, precision=precision)   # (Cout, T)
    prior = jnp.dot(q_ref[...], wint_ref[...],
                    preferred_element_type=jnp.float32, precision=precision)  # (Cout, T)
    o_ref[...] = jnp.maximum(main + prior, 0.0).astype(o_ref.dtype)


def psp_forward(feats, stage_weights, bottleneck_w, bottleneck_b, sizes=(1, 2, 3, 6)):
    """feats: (B, C, H, W); stage_weights: list of (C, C, 1, 1);
    bottleneck_w: (Cout, C*(len(sizes)+1), 1, 1); bottleneck_b: (Cout,)."""
    B, C, H, W = feats.shape
    n_stage = len(sizes)
    c_out = bottleneck_w.shape[0]
    dtype = feats.dtype
    wb = bottleneck_w.reshape(c_out, C * (n_stage + 1)).astype(jnp.float32)

    # ---- tiny precompute: one-pass pooling + fold convs/upsample/bias ---------
    pools = _adaptive_max_pools(feats, sizes)          # single HBM read of feats
    q_blocks, wint_blocks = [], []
    for k, s in enumerate(sizes):
        ws = stage_weights[k].reshape(C, C).astype(jnp.float32)
        wb_k = wb[:, k * C:(k + 1) * C]                                   # (Cout, C)
        m_k = jnp.einsum("oc,cd->od", wb_k, ws, precision=_HIGH)          # merged 1x1 convs
        p_k = pools[k].astype(jnp.float32)                                # (B, C, s, s)
        q_k = jnp.einsum("od,bdij->boij", m_k, p_k, precision=_HIGH)      # (B, Cout, s, s)
        q_blocks.append(q_k.reshape(B, c_out, s * s))
        r_h = _interp_matrix(H, s)                                        # (H, s)
        r_w = _interp_matrix(W, s)                                        # (W, s)
        wint_blocks.append(jnp.einsum("yi,xj->ijyx", r_h, r_w,
                                      precision=_HIGH).reshape(s * s, H * W))
    # bottleneck bias rides along as one extra "coarse cell" with all-ones weights
    q_blocks.append(jnp.broadcast_to(
        bottleneck_b.astype(jnp.float32).reshape(1, c_out, 1), (B, c_out, 1)))
    wint_blocks.append(jnp.ones((1, H * W), dtype=jnp.float32))
    q_cat = jnp.concatenate(q_blocks, axis=-1)                            # (B, Cout, S)
    w_int = jnp.concatenate(wint_blocks, axis=0)                          # (S, HW)
    S = q_cat.shape[-1]

    # cast everything the kernel streams to the activation dtype (bf16 for bf16
    # activations): halves HBM/VMEM traffic, single-pass MXU; f32 accumulation.
    q_cat = q_cat.astype(dtype)
    w_int = w_int.astype(dtype)
    w_last = wb[:, n_stage * C:].astype(dtype)                            # (Cout, C)

    # ---- lane-dense, padded, HW-tiled layout ----------------------------------
    hw = H * W
    vmem_limit = _vmem_limit_bytes()
    t = _pick_tile(hw, C, c_out, S, jnp.dtype(dtype).itemsize, B,
                   budget_bytes=int(vmem_limit * 0.8))
    hw_p = _round_up(hw, t)
    x = feats.reshape(B, C, hw)
    if hw_p != hw:
        x = jnp.pad(x, ((0, 0), (0, 0), (0, hw_p - hw)))
        w_int = jnp.pad(w_int, ((0, 0), (0, hw_p - hw)))
    n_tiles = hw_p // t

    def _run(single_buffer_resident, precision):
        resident_kw = {"pipeline_mode": pl.Buffered(1)} if single_buffer_resident else {}
        kernel = functools.partial(_psp_bottleneck_kernel, precision=precision)
        call = pl.pallas_call(
            kernel,
            out_shape=jax.ShapeDtypeStruct((B, c_out, hw_p), dtype),
            grid_spec=pltpu.PrefetchScalarGridSpec(
                num_scalar_prefetch=0,
                grid=(B, n_tiles),
                in_specs=[
                    # activation tile: batch squeezed, C whole on sublanes, T lanes
                    pl.BlockSpec((pl.Squeezed(), C, t), lambda b, i: (b, 0, i)),
                    # identity-branch weight: constant block -> resident (1 buffer)
                    pl.BlockSpec((c_out, C), lambda b, i: (0, 0), **resident_kw),
                    # interp weights stream with the tile (re-streamed per batch;
                    # dtype cast halves that cost and B is usually 1)
                    pl.BlockSpec((S, t), lambda b, i: (0, i)),
                    # merged pooled contributions: constant per batch -> resident
                    pl.BlockSpec((pl.Squeezed(), c_out, S), lambda b, i: (b, 0, 0)),
                ],
                out_specs=pl.BlockSpec((pl.Squeezed(), c_out, t),
                                       lambda b, i: (b, 0, i)),
            ),
            compiler_params=pltpu.CompilerParams(
                dimension_semantics=("parallel", "parallel"),
                vmem_limit_bytes=vmem_limit,
            ),
        )
        return call(x, w_last, w_int, q_cat)

    prec = _HIGH if dtype == jnp.float32 else None
    try:
        out = _run(True, prec)
    except Exception:
        # TODO(synk): this jax build rejected Buffered(1)/precision on the TPU
        # lowering path; fall back to the plain double-buffered spec.
        out = _run(False, None)

    return out[:, :, :hw].reshape(B, c_out, H, W)


# --------------------------------------------------------------------------
# pure-JAX reference of the PyTorch forward (independent formulation)
# --------------------------------------------------------------------------
def _adaptive_max_pool_ref(x, s):
    B, C, H, W = x.shape
    rows, cols = _pool_bins(H, s), _pool_bins(W, s)
    out_rows = []
    for (r0, r1) in rows:
        cells = [jnp.max(x[:, :, r0:r1, c0:c1], axis=(2, 3)) for (c0, c1) in cols]
        out_rows.append(jnp.stack(cells, axis=-1))
    return jnp.stack(out_rows, axis=-2)


def _bilinear_resize(x, H, W):
    B, C, h, w = x.shape
    ys = jnp.clip((jnp.arange(H, dtype=jnp.float32) + 0.5) * (h / H) - 0.5, 0.0, h - 1)
    xs = jnp.clip((jnp.arange(W, dtype=jnp.float32) + 0.5) * (w / W) - 0.5, 0.0, w - 1)
    y0 = jnp.floor(ys).astype(jnp.int32); y1 = jnp.minimum(y0 + 1, h - 1)
    x0 = jnp.floor(xs).astype(jnp.int32); x1 = jnp.minimum(x0 + 1, w - 1)
    wy = (ys - y0.astype(jnp.float32))[None, None, :, None]
    wx = (xs - x0.astype(jnp.float32))[None, None, None, :]
    g = lambda yi, xi: x[:, :, yi, :][:, :, :, xi]
    top = g(y0, x0) * (1.0 - wx) + g(y0, x1) * wx
    bot = g(y1, x0) * (1.0 - wx) + g(y1, x1) * wx
    return top * (1.0 - wy) + bot * wy


def _psp_reference(feats, stage_weights, bottleneck_w, bottleneck_b, sizes):
    B, C, H, W = feats.shape
    priors = []
    for s, w4 in zip(sizes, stage_weights):
        ws = w4.reshape(w4.shape[0], w4.shape[1])
        p = _adaptive_max_pool_ref(feats, s)
        p = jnp.einsum("oc,bcij->boij", ws, p, precision=_HIGH)
        priors.append(_bilinear_resize(p, H, W))
    priors.append(feats)
    cat = jnp.concatenate(priors, axis=1)
    c_out = bottleneck_w.shape[0]
    wb = bottleneck_w.reshape(c_out, cat.shape[1])
    out = jnp.einsum("oc,bcyx->boyx", wb, cat, precision=_HIGH)
    out = out + bottleneck_b.reshape(1, c_out, 1, 1)
    return jnp.maximum(out, 0.0)


# --------------------------------------------------------------------------
if __name__ == "__main__":
    key = jax.random.PRNGKey(0)
    ks = jax.random.split(key, 8)

    B, C, H, W = 2, 4, 16, 16
    C_OUT = 8
    SIZES = (1, 2, 3, 6)

    feats = jax.random.normal(ks[0], (B, C, H, W), dtype=jnp.float32)

    stage_ws = []
    bound = 1.0 / math.sqrt(C)
    for k in range(len(SIZES)):
        stage_ws.append(jax.random.uniform(
            ks[1 + k], (C, C, 1, 1), jnp.float32, -bound, bound))

    fan_in = C * (len(SIZES) + 1)
    bound = 1.0 / math.sqrt(fan_in)
    wb = jax.random.uniform(ks[5], (C_OUT, fan_in, 1, 1), jnp.float32, -bound, bound)
    bb = jax.random.uniform(ks[6], (C_OUT,), jnp.float32, -bound, bound)

    out = psp_forward(feats, stage_ws, wb, bb, SIZES)
    out = jax.block_until_ready(out)

    ref = _psp_reference(feats, stage_ws, wb, bb, SIZES)
    assert out.shape == ref.shape == (B, C_OUT, H, W)
    max_err = float(jnp.max(jnp.abs(out - ref)))
    assert jnp.allclose(out, ref, atol=1e-4, rtol=1e-4), f"mismatch vs reference: {max_err}"

    print("KERNEL_OK")
</pallas_src>

<mosaic_0001>
module attributes {stable_mosaic.version = 11 : i64} {
  func.func @_psp_bottleneck_kernel(%arg0: i32, %arg1: i32, %arg2: memref<1x4x256xf32, #tpu.memory_space<vmem>>, %arg3: memref<8x4xf32, #tpu.memory_space<vmem>>, %arg4: memref<51x256xf32, #tpu.memory_space<vmem>>, %arg5: memref<1x8x51xf32, #tpu.memory_space<vmem>>, %arg6: memref<1x8x256xf32, #tpu.memory_space<vmem>>) attributes {dimension_semantics = [#tpu.dimension_semantics<parallel>, #tpu.dimension_semantics<parallel>], iteration_bounds = array<i64: 2, 1>, scalar_prefetch = 0 : i64, scratch_operands = 0 : i64, tpu.core_type = #tpu.core_type<tc>, window_params = [{transform_indices = @transform_0, window_bounds = array<i64: 1, 4, 256>}, {pipeline_mode = #tpu.pipeline_mode<synchronous>, transform_indices = @transform_1, window_bounds = array<i64: 8, 4>}, {transform_indices = @transform_2, window_bounds = array<i64: 51, 256>}, {transform_indices = @transform_3, window_bounds = array<i64: 1, 8, 51>}, {transform_indices = @transform_4, window_bounds = array<i64: 1, 8, 256>}]} {
    %c0 = arith.constant 0 : index
    %c0_0 = arith.constant 0 : index
    %0 = vector.load %arg3[%c0, %c0_0] : memref<8x4xf32, #tpu.memory_space<vmem>>, vector<8x4xf32>
    %c0_1 = arith.constant 0 : index
    %c0_2 = arith.constant 0 : index
    %c0_3 = arith.constant 0 : index
    %1 = vector.load %arg2[%c0_1, %c0_2, %c0_3] : memref<1x4x256xf32, #tpu.memory_space<vmem>>, vector<1x4x256xf32>
    %2 = vector.shape_cast %1 : vector<1x4x256xf32> to vector<4x256xf32>
    %cst = arith.constant dense<0.000000e+00> : vector<8x256xf32>
    %3 = tpu.matmul %0, %2, %cst {dimension_numbers = #tpu.dot_dimension_numbers<[1], [0], [0], [1], [0, 0, 1, 1], [], []>, precision = #tpu.contract_precision<fp32>} : vector<8x4xf32>, vector<4x256xf32>, vector<8x256xf32> -> vector<8x256xf32>
    %c0_4 = arith.constant 0 : index
    %c0_5 = arith.constant 0 : index
    %c0_6 = arith.constant 0 : index
    %4 = vector.load %arg5[%c0_4, %c0_5, %c0_6] : memref<1x8x51xf32, #tpu.memory_space<vmem>>, vector<1x8x51xf32>
    %5 = vector.shape_cast %4 : vector<1x8x51xf32> to vector<8x51xf32>
    %c0_7 = arith.constant 0 : index
    %c0_8 = arith.constant 0 : index
    %6 = vector.load %arg4[%c0_7, %c0_8] : memref<51x256xf32, #tpu.memory_space<vmem>>, vector<51x256xf32>
    %cst_9 = arith.constant dense<0.000000e+00> : vector<8x256xf32>
    %7 = tpu.matmul %5, %6, %cst_9 {dimension_numbers = #tpu.dot_dimension_numbers<[1], [0], [0], [1], [0, 0, 1, 1], [], []>, precision = #tpu.contract_precision<fp32>} : vector<8x51xf32>, vector<51x256xf32>, vector<8x256xf32> -> vector<8x256xf32>
    %8 = arith.addf %3, %7 : vector<8x256xf32>
    %cst_10 = arith.constant 0.000000e+00 : f32
    %9 = vector.broadcast %cst_10 : f32 to vector<8x256xf32>
    %10 = arith.maximumf %8, %9 : vector<8x256xf32>
    %c0_11 = arith.constant 0 : index
    %c0_12 = arith.constant 0 : index
    %c0_13 = arith.constant 0 : index
    %11 = vector.load %arg6[%c0_11, %c0_12, %c0_13] : memref<1x8x256xf32, #tpu.memory_space<vmem>>, vector<1x8x256xf32>
    %12 = vector.shape_cast %11 : vector<1x8x256xf32> to vector<8x256xf32>
    %13 = vector.shape_cast %10 : vector<8x256xf32> to vector<1x8x256xf32>
    tpu.vector_store %arg6[%c0_11, %c0_12, %c0_13], %13 {strides = array<i32>} : memref<1x8x256xf32, #tpu.memory_space<vmem>>, vector<1x8x256xf32>,
    return
  }
  func.func @transform_0(%arg0: i32, %arg1: i32) -> (i32, i32, i32) {
    %c0_i32 = arith.constant 0 : i32
    %c0_i32_0 = arith.constant 0 : i32
    return %arg0, %c0_i32, %arg1 : i32, i32, i32
  }
  func.func @transform_1(%arg0: i32, %arg1: i32) -> (i32, i32) {
    %c0_i32 = arith.constant 0 : i32
    %c0_i32_0 = arith.constant 0 : i32
    %c0_i32_1 = arith.constant 0 : i32
    return %c0_i32, %c0_i32_0 : i32, i32
  }
  func.func @transform_2(%arg0: i32, %arg1: i32) -> (i32, i32) {
    %c0_i32 = arith.constant 0 : i32
    %c0_i32_0 = arith.constant 0 : i32
    return %c0_i32, %arg1 : i32, i32
  }
  func.func @transform_3(%arg0: i32, %arg1: i32) -> (i32, i32, i32) {
    %c0_i32 = arith.constant 0 : i32
    %c0_i32_0 = arith.constant 0 : i32
    %c0_i32_1 = arith.constant 0 : i32
    return %arg0, %c0_i32, %c0_i32_0 : i32, i32, i32
  }
  func.func @transform_4(%arg0: i32, %arg1: i32) -> (i32, i32, i32) {
    %c0_i32 = arith.constant 0 : i32
    %c0_i32_0 = arith.constant 0 : i32
    return %arg0, %c0_i32, %arg1 : i32, i32, i32
  }
}

module attributes {stable_mosaic.version = 11 : i64} {
  func.func @_psp_bottleneck_kernel(%arg0: i32, %arg1: i32, %arg2: memref<1x4x256xf32, #tpu.memory_space<vmem>>, %arg3: memref<8x4xf32, #tpu.memory_space<vmem>>, %arg4: memref<51x256xf32, #tpu.memory_space<vmem>>, %arg5: memref<1x8x51xf32, #tpu.memory_space<vmem>>, %arg6: memref<1x8x256xf32, #tpu.memory_space<vmem>>) attributes {dimension_semantics = [#tpu.dimension_semantics<parallel>, #tpu.dimension_semantics<parallel>], iteration_bounds = array<i64: 2, 1>, scalar_prefetch = 0 : i64, scratch_operands = 0 : i64, tpu.core_type = #tpu.core_type<tc>, window_params = [{transform_indices = @transform_0, window_bounds = array<i64: 1, 4, 256>}, {pipeline_mode = #tpu.pipeline_mode<synchronous>, transform_indices = @transform_1, window_bounds = array<i64: 8, 4>}, {transform_indices = @transform_2, window_bounds = array<i64: 51, 256>}, {transform_indices = @transform_3, window_bounds = array<i64: 1, 8, 51>}, {transform_indices = @transform_4, window_bounds = array<i64: 1, 8, 256>}]} {
    %c0 = arith.constant 0 : index
    %c0_0 = arith.constant 0 : index
    %0 = vector.load %arg3[%c0, %c0_0] : memref<8x4xf32, #tpu.memory_space<vmem>>, vector<8x4xf32>
    %c0_1 = arith.constant 0 : index
    %c0_2 = arith.constant 0 : index
    %c0_3 = arith.constant 0 : index
    %1 = vector.load %arg2[%c0_1, %c0_2, %c0_3] : memref<1x4x256xf32, #tpu.memory_space<vmem>>, vector<1x4x256xf32>
    %2 = vector.shape_cast %1 : vector<1x4x256xf32> to vector<4x256xf32>
    %cst = arith.constant dense<0.000000e+00> : vector<8x256xf32>
    %3 = tpu.matmul %0, %2, %cst {dimension_numbers = #tpu.dot_dimension_numbers<[1], [0], [0], [1], [0, 0, 1, 1], [], []>} : vector<8x4xf32>, vector<4x256xf32>, vector<8x256xf32> -> vector<8x256xf32>
    %c0_4 = arith.constant 0 : index
    %c0_5 = arith.constant 0 : index
    %c0_6 = arith.constant 0 : index
    %4 = vector.load %arg5[%c0_4, %c0_5, %c0_6] : memref<1x8x51xf32, #tpu.memory_space<vmem>>, vector<1x8x51xf32>
    %5 = vector.shape_cast %4 : vector<1x8x51xf32> to vector<8x51xf32>
    %c0_7 = arith.constant 0 : index
    %c0_8 = arith.constant 0 : index
    %6 = vector.load %arg4[%c0_7, %c0_8] : memref<51x256xf32, #tpu.memory_space<vmem>>, vector<51x256xf32>
    %cst_9 = arith.constant dense<0.000000e+00> : vector<8x256xf32>
    %7 = tpu.matmul %5, %6, %cst_9 {dimension_numbers = #tpu.dot_dimension_numbers<[1], [0], [0], [1], [0, 0, 1, 1], [], []>} : vector<8x51xf32>, vector<51x256xf32>, vector<8x256xf32> -> vector<8x256xf32>
    %8 = arith.addf %3, %7 : vector<8x256xf32>
    %cst_10 = arith.constant 0.000000e+00 : f32
    %9 = vector.broadcast %cst_10 : f32 to vector<8x256xf32>
    %10 = arith.maximumf %8, %9 : vector<8x256xf32>
    %c0_11 = arith.constant 0 : index
    %c0_12 = arith.constant 0 : index
    %c0_13 = arith.constant 0 : index
    %11 = vector.load %arg6[%c0_11, %c0_12, %c0_13] : memref<1x8x256xf32, #tpu.memory_space<vmem>>, vector<1x8x256xf32>
    %12 = vector.shape_cast %11 : vector<1x8x256xf32> to vector<8x256xf32>
    %13 = vector.shape_cast %10 : vector<8x256xf32> to vector<1x8x256xf32>
    tpu.vector_store %arg6[%c0_11, %c0_12, %c0_13], %13 {strides = array<i32>} : memref<1x8x256xf32, #tpu.memory_space<vmem>>, vector<1x8x256xf32>,
    return
  }
  func.func @transform_0(%arg0: i32, %arg1: i32) -> (i32, i32, i32) {
    %c0_i32 = arith.constant 0 : i32
    %c0_i32_0 = arith.constant 0 : i32
    return %arg0, %c0_i32, %arg1 : i32, i32, i32
  }
  func.func @transform_1(%arg0: i32, %arg1: i32) -> (i32, i32) {
    %c0_i32 = arith.constant 0 : i32
    %c0_i32_0 = arith.constant 0 : i32
    %c0_i32_1 = arith.constant 0 : i32
    return %c0_i32, %c0_i32_0 : i32, i32
  }
  func.func @transform_2(%arg0: i32, %arg1: i32) -> (i32, i32) {
    %c0_i32 = arith.constant 0 : i32
    %c0_i32_0 = arith.constant 0 : i32
    return %c0_i32, %arg1 : i32, i32
  }
  func.func @transform_3(%arg0: i32, %arg1: i32) -> (i32, i32, i32) {
    %c0_i32 = arith.constant 0 : i32
    %c0_i32_0 = arith.constant 0 : i32
    %c0_i32_1 = arith.constant 0 : i32
    return %arg0, %c0_i32, %c0_i32_0 : i32, i32, i32
  }
  func.func @transform_4(%arg0: i32, %arg1: i32) -> (i32, i32, i32) {
    %c0_i32 = arith.constant 0 : i32
    %c0_i32_0 = arith.constant 0 : i32
    return %arg0, %c0_i32, %arg1 : i32, i32, i32
  }
}

</mosaic_0001>

<llo_original>
// kernel: tpu_custom_call.1
$region0: #{tpu_custom_call.1}
  #allocation0 [shape = 'u32[]', space=smem, size = 0x4, offset = 0x4, fixed_abs, tag = 'smem constant byte address 0x4 - core index']
  #allocation1 [shape = 'u32[144,128]{1,0:T(1,128)}', space=vmem, size = 0x12000, scoped, tag = 'internal scratch']
  %s0 = inlined_call_operand.hbm [shape: f32[2,4,256], index: 0, kind: input, shape index: {}]
  %s1 = inlined_call_operand.vmem [shape: f32[8,4], index: 1, kind: input, shape index: {}]
  %s2 = inlined_call_operand.hbm [shape: f32[51,256], index: 2, kind: input, shape index: {}]
  %s3 = inlined_call_operand.vmem [shape: f32[2,8,51], index: 3, kind: input, shape index: {}]
  %s4 = inlined_call_operand.hbm [shape: f32[2,8,256], index: 4, kind: output, shape index: {}]
  %s5 = sld [smem:[#allocation0]]
  $region57: #{tpu_custom_call.1} parent=0
    _
  %s7 = ssub.s32 1, %s5
  %s8 = scalar_select 0, %s7, %s5
  $region1: #{tpu_custom_call.1} parent=0
    #allocation2 [shape = 'u8[8192]{0}', space=vmem, size = 0x2000, scoped, tag = 'input window, operand 0']
    #allocation3 [shape = 's32[2]{0}', space=sflag, size = 0x8, scoped, tag = 'scoped memory for tpu_custom_call.1']
    #allocation4 [shape = 's32[2]{0}', space=sflag, size = 0x8, scoped, tag = 'scoped memory for tpu_custom_call.1']
    #allocation5 [shape = 'u8[57344]{0}', space=vmem, size = 0xe000, scoped, tag = 'input window, operand 2, single buffered']
    #allocation6 [shape = 's32[1]{0}', space=sflag, size = 0x4, scoped, tag = 'scoped memory for tpu_custom_call.1']
    #allocation7 [shape = 'u8[16384]{0}', space=vmem, size = 0x4000, scoped, tag = 'output window, operand 0']
    %9 = vsyncpa [#allocation3], 0
    %s10 = scalar_lea.sflag [#allocation3], 1
    %11 = vsyncpa %s10, 0
    %12 = vsyncpa [#allocation6], 0
    %13 = vsyncpa [#allocation4], 0
    %s14 = scalar_lea.sflag [#allocation4], 1
    %15 = vsyncpa %s14, 0
    loop: start=0, step=1, limit=4
    $region2: #{tpu_custom_call.1} parent=1 // loop_pre_header
      _
    $region3: #{tpu_custom_call.1} parent=1 // loop_header
      %s17 = sphi 0, %s21
      %p18 = scmp.ge.s32.totalorder %s17, 4
      %s24 = sphi 0, %s36
      %s25 = sphi 0, %s32
      %s26 = sphi 0, %s24
      %s27 = sphi 0, %s25
      %s28 = sphi 0, %s26
      %s29 = sphi 0, %s27
      %s41 = sphi 0, %s43
      %s44 = sphi 0, %s41
      %s45 = sphi 0, %s44
      %s61 = sphi 0, %s45
      %s65 = sphi 0, %s65
      %s67 = sphi 0, %s65
      %s68 = sphi 0, %s67
      %s82 = sphi 0, %s68
      %s88 = sphi 0, %s90
      %s91 = sphi 0, %s88
      %s92 = sphi 0, %s91
      %s108 = sphi 0, %s92
      %s114 = sphi 0, %s116
      %s117 = sphi 0, %s114
      %s118 = sphi 0, %s117
      %s134 = sphi 0, %s118
      %s142 = sphi 0, %s144
      %s145 = sphi 0, %s142
      %s146 = sphi 0, %s145
      %s162 = sphi 0, %s146
    $region4: #{tpu_custom_call.1} parent=1 // loop_header_branch
      %20 = sbr.rel (%p18) target = $region8
    $region5: #{tpu_custom_call.1} parent=1 // loop_body
      %s22 = ssub.s32 %s17, 1
      %s23 = ssub.s32 %s17, 2
      %s30 = sadd.s32 1, %s25
      %p31 = scmp.ge.s32.totalorder %s30, 1
      %s32 = scalar_select %p31, 0, %s30
      %s33 = sadd.s32 1, %s24
      %s34 = scalar_select %p31, %s33, %s24
      %p35 = scmp.ge.s32.totalorder %s34, 2
      %s36 = scalar_select %p35, 0, %s34
      %s37 = ssub.s32 %s24, %s36
      %s38 = ssub.s32 %s25, %s32
      %s39 = sor.u32 %s37, %s38
      %p40 = scmp.eq.s32.totalorder %s39, 0
      %s42 = sadd.s32 %s41, 1
      %s43 = scalar_select %p40, %s41, %s42
      %p46 = pneg %p40
      %p47 = scmp.eq.s32.totalorder %s17, 1
      %p48 = por %p46, %p47
      %p49 = scmp.ne.s32.totalorder %s41, %s44
      %p50 = scmp.eq.s32.totalorder %s17, 0
      %p51 = por %p49, %p50
      %p52 = scmp.ne.s32.totalorder %s41, %s44
      %p53 = scmp.eq.s32.totalorder %s22, 1
      %p54 = por %p52, %p53
      %p55 = scmp.ne.s32.totalorder %s44, %s45
      %p56 = scmp.eq.s32.totalorder %s22, 0
      %p57 = por %p55, %p56
      %p58 = scmp.ne.s32.totalorder %s44, %s45
      %p59 = scmp.eq.s32.totalorder %s23, 1
      %p60 = por %p58, %p59
      %p62 = scmp.ne.s32.totalorder %s45, %s61
      %p63 = scmp.eq.s32.totalorder %s23, 0
      %p64 = por %p62, %p63
      %s66 = sadd.s32 %s65, 1
      %p69 = scmp.eq.s32.totalorder %s17, 1
      %p70 = scmp.ne.s32.totalorder %s65, %s67
      %p71 = scmp.eq.s32.totalorder %s17, 0
      %p72 = por %p70, %p71
      %p73 = scmp.ne.s32.totalorder %s65, %s67
      %p74 = scmp.eq.s32.totalorder %s22, 1
      %p75 = por %p73, %p74
      %p76 = scmp.ne.s32.totalorder %s67, %s68
      %p77 = scmp.eq.s32.totalorder %s22, 0
      %p78 = por %p76, %p77
      %p79 = scmp.ne.s32.totalorder %s67, %s68
      %p80 = scmp.eq.s32.totalorder %s23, 1
      %p81 = por %p79, %p80
      %p83 = scmp.ne.s32.totalorder %s68, %s82
      %p84 = scmp.eq.s32.totalorder %s23, 0
      %p85 = por %p83, %p84
      %s86 = ssub.s32 %s25, %s32
      %p87 = scmp.eq.s32.totalorder %s86, 0
      %s89 = sadd.s32 %s88, 1
      %s90 = scalar_select %p87, %s88, %s89
      %p93 = pneg %p87
      %p94 = scmp.eq.s32.totalorder %s17, 1
      %p95 = por %p93, %p94
      %p96 = scmp.ne.s32.totalorder %s88, %s91
      %p97 = scmp.eq.s32.totalorder %s17, 0
      %p98 = por %p96, %p97
      %p99 = scmp.ne.s32.totalorder %s88, %s91
      %p100 = scmp.eq.s32.totalorder %s22, 1
      %p101 = por %p99, %p100
      %p102 = scmp.ne.s32.totalorder %s91, %s92
      %p103 = scmp.eq.s32.totalorder %s22, 0
      %p104 = por %p102, %p103
      %p105 = scmp.ne.s32.totalorder %s91, %s92
      %p106 = scmp.eq.s32.totalorder %s23, 1
      %p107 = por %p105, %p106
      %p109 = scmp.ne.s32.totalorder %s92, %s108
      %p110 = scmp.eq.s32.totalorder %s23, 0
      %p111 = por %p109, %p110
      %s112 = ssub.s32 %s24, %s36
      %p113 = scmp.eq.s32.totalorder %s112, 0
      %s115 = sadd.s32 %s114, 1
      %s116 = scalar_select %p113, %s114, %s115
      %p119 = pneg %p113
      %p120 = scmp.eq.s32.totalorder %s17, 1
      %p121 = por %p119, %p120
      %p122 = scmp.ne.s32.totalorder %s114, %s117
      %p123 = scmp.eq.s32.totalorder %s17, 0
      %p124 = por %p122, %p123
      %p125 = scmp.ne.s32.totalorder %s114, %s117
      %p126 = scmp.eq.s32.totalorder %s22, 1
      %p127 = por %p125, %p126
      %p128 = scmp.ne.s32.totalorder %s117, %s118
      %p129 = scmp.eq.s32.totalorder %s22, 0
      %p130 = por %p128, %p129
      %p131 = scmp.ne.s32.totalorder %s117, %s118
      %p132 = scmp.eq.s32.totalorder %s23, 1
      %p133 = por %p131, %p132
      %p135 = scmp.ne.s32.totalorder %s118, %s134
      %p136 = scmp.eq.s32.totalorder %s23, 0
      %p137 = por %p135, %p136
      %s138 = ssub.s32 %s24, %s36
      %s139 = ssub.s32 %s25, %s32
      %s140 = sor.u32 %s138, %s139
      %p141 = scmp.eq.s32.totalorder %s140, 0
      %s143 = sadd.s32 %s142, 1
      %s144 = scalar_select %p141, %s142, %s143
      %p147 = pneg %p141
      %p148 = scmp.eq.s32.totalorder %s17, 1
      %p149 = por %p147, %p148
      %p150 = scmp.ne.s32.totalorder %s142, %s145
      %p151 = scmp.eq.s32.totalorder %s17, 0
      %p152 = por %p150, %p151
      %p153 = scmp.ne.s32.totalorder %s142, %s145
      %p154 = scmp.eq.s32.totalorder %s22, 1
      %p155 = por %p153, %p154
      %p156 = scmp.ne.s32.totalorder %s145, %s146
      %p157 = scmp.eq.s32.totalorder %s22, 0
      %p158 = por %p156, %p157
      %p159 = scmp.ne.s32.totalorder %s145, %s146
      %p160 = scmp.eq.s32.totalorder %s23, 1
      %p161 = por %p159, %p160
      %p163 = scmp.ne.s32.totalorder %s146, %s162
      %p164 = scmp.eq.s32.totalorder %s23, 0
      %p165 = por %p163, %p164
      %p166 = scmp.le.s32.totalorder 1, %s17
      %p167 = scmp.lt.s32.totalorder %s17, 3
      %p168 = pnand %p166, %p167
      %p169 = pneg %p168
      // Predicated region
      $region9: #{tpu_custom_call.1} parent=5 // pred_check
        _
      $region10: #{tpu_custom_call.1} parent=5 // pred_check_branch
        %171 = sbr.rel (%p168) target = $region12
      $region11: #{tpu_custom_call.1} parent=5 // pred_region
        %s172 = ssub.s32 %s17, 1
        // Predicated region
        $region13: #{tpu_custom_call.1} parent=11 // pred_check
          %p173 = pneg %p78
        $region14: #{tpu_custom_call.1} parent=11 // pred_check_branch
          %175 = sbr.rel (%p173) target = $region16
        $region15: #{tpu_custom_call.1} parent=11 // pred_region
          _
        $region16: #{tpu_custom_call.1} parent=11 // pred_fallthru
          _
        // Predicated region
        $region17: #{tpu_custom_call.1} parent=11 // pred_check
          %p176 = pneg %p104
        $region18: #{tpu_custom_call.1} parent=11 // pred_check_branch
          %178 = sbr.rel (%p176) target = $region20
        $region19: #{tpu_custom_call.1} parent=11 // pred_region
          %s179 = smul.u32 2, %s27
          %s181 = ssub.s32 1792, 1792
          %182 = vsyncadd [#allocation6], %s181
          %s183 = smul.addr %s179, 128
          %s184 = scalar_lea.hbm %s2, %s183
          %s185 = sshll.u32 [#allocation5], 4
          %s186 = int_to_ptr.vmem [resolvable:$true] %s185
          %191 = dma.hbm_to_vmem [thread:$0]  %s184, 1792, %s186, [#allocation6], 256, 256, 16
        $region20: #{tpu_custom_call.1} parent=11 // pred_fallthru
          _
      $region12: #{tpu_custom_call.1} parent=5 // pred_fallthru
        _
      %p192 = scmp.lt.s32.totalorder %s17, 2
      // Predicated region
      $region21: #{tpu_custom_call.1} parent=5 // pred_check
        %p193 = pneg %p192
      $region22: #{tpu_custom_call.1} parent=5 // pred_check_branch
        %195 = sbr.rel (%p193) target = $region24
      $region23: #{tpu_custom_call.1} parent=5 // pred_region
        // Predicated region
        $region25: #{tpu_custom_call.1} parent=23 // pred_check
          %p196 = pneg %p51
        $region26: #{tpu_custom_call.1} parent=23 // pred_check_branch
          %198 = sbr.rel (%p196) target = $region28
        $region27: #{tpu_custom_call.1} parent=23 // pred_region
          %s199 = sand.u32 %s41, 1
          %s200 = scalar_lea.sflag [#allocation3], %s199
          %s201 = sand.u32 %s41, 1
          %s202 = smul.addr %s201, 8
          %s203 = scalar_lea.vmem [#allocation2], %s202
          %s204 = smul.u32 2, %s25
          %s206 = ssub.s32 128, 128
          %207 = vsyncadd %s200, %s206
          %s208 = smul.addr %s24, 2
          %s209 = sadd.s32 %s204, %s208
          %s210 = smul.addr %s209, 64
          %s211 = scalar_lea.hbm %s0, %s210
          %s213 = sshll.u32 %s203, 4
          %s214 = int_to_ptr.vmem [resolvable:$true] %s213
          %216 = dma.hbm_to_vmem [thread:$0]  %s211, 128, %s214, %s200
        $region28: #{tpu_custom_call.1} parent=23 // pred_fallthru
          _
        // Predicated region
        $region29: #{tpu_custom_call.1} parent=23 // pred_check
          %p217 = pneg %p124
        $region30: #{tpu_custom_call.1} parent=23 // pred_check_branch
          %219 = sbr.rel (%p217) target = $region32
        $region31: #{tpu_custom_call.1} parent=23 // pred_region
          %p220 = scmp.lt.s32.totalorder %s24, 1
          %s221 = scalar_select %p220, %s24, 1
          %s222 = smul.addr %s221, 8
          %s223 = scalar_lea.vmem %s3, %s222
        $region32: #{tpu_custom_call.1} parent=23 // pred_fallthru
          _
      $region24: #{tpu_custom_call.1} parent=5 // pred_fallthru
        _
      %p224 = scmp.le.s32.totalorder 1, %s17
      %p225 = scmp.lt.s32.totalorder %s17, 3
      %p226 = pnand %p224, %p225
      %p227 = pneg %p226
      // Predicated region
      $region33: #{tpu_custom_call.1} parent=5 // pred_check
        _
      $region34: #{tpu_custom_call.1} parent=5 // pred_check_branch
        %229 = sbr.rel (%p226) target = $region36
      $region35: #{tpu_custom_call.1} parent=5 // pred_region
        %s230 = ssub.s32 %s17, 1
        %s231 = sand.u32 %s44, 1
        %s232 = scalar_lea.sflag [#allocation3], %s231
        %s233 = sand.u32 %s44, 1
        %s234 = smul.addr %s233, 8
        %s235 = scalar_lea.vmem [#allocation2], %s234
        // Predicated region
        $region37: #{tpu_custom_call.1} parent=35 // pred_check
          %p236 = pneg %p57
        $region38: #{tpu_custom_call.1} parent=35 // pred_check_branch
          %238 = sbr.rel (%p236) target = $region40
        $region39: #{tpu_custom_call.1} parent=35 // pred_region
          %239 = dma.done %s232, 128
        $region40: #{tpu_custom_call.1} parent=35 // pred_fallthru
          _
        // Predicated region
        $region41: #{tpu_custom_call.1} parent=35 // pred_check
          %p240 = pneg %p104
        $region42: #{tpu_custom_call.1} parent=35 // pred_check_branch
          %242 = sbr.rel (%p240) target = $region44
        $region43: #{tpu_custom_call.1} parent=35 // pred_region
          %243 = dma.done [#allocation6], 1792
        $region44: #{tpu_custom_call.1} parent=35 // pred_fallthru
          _
        %s244 = sand.u32 %s44, 1
        %s245 = scalar_lea.sflag [#allocation3], %s244
        %s246 = sand.u32 %s44, 1
        %s247 = smul.addr %s246, 8
        %s248 = scalar_lea.vmem [#allocation2], %s247
        %p249 = pneg %p57
        %p250 = pneg %p54
        %p251 = pneg %p78
        %p252 = pneg %p75
        %p253 = pneg %p104
        %p254 = pneg %p101
        %p255 = scmp.lt.s32.totalorder %s26, 1
        %s256 = scalar_select %p255, %s26, 1
        %s257 = smul.addr %s256, 8
        %s258 = scalar_lea.vmem %s3, %s257
        %p259 = pneg %p130
        %p260 = pneg %p127
        %p261 = pneg %p158
        %p262 = pneg %p155
        %s263 = sand.u32 %s145, 1
        %s264 = scalar_lea.sflag [#allocation4], %s263
        %s265 = sand.u32 %s145, 1
        %s266 = smul.addr %s265, 16
        %s267 = scalar_lea.vmem [#allocation7], %s266
        %s268 = smul.u32 2, %s27
        %s269 = smul.u32 2, %s27
        %p270 = scmp.lt.s32.totalorder %s26, 1
        %s271 = scalar_select %p270, %s26, 1
        %s272 = smul.addr %s271, 8
        %s273 = scalar_lea.vmem %s3, %s272
        %s274 = smul.u32 2, %s27
        %v275 = vld [vmem:[%s1] sm:$0xff]
        %v276 = vld [vmem:[%s235] sm:$0xff]
        %v277 = vld [vmem:[%s273] sm:$0xff]
        %v278 = vld [vmem:[#allocation5] sm:$0xff]
        %v279 = vld [vmem:[#allocation5 + $0x8] sm:$0xff]
        %v280 = vld [vmem:[#allocation5 + $0x10] sm:$0xff]
        %v281 = vld [vmem:[#allocation5 + $0x18] sm:$0xff]
        %v282 = vld [vmem:[#allocation5 + $0x20] sm:$0xff]
        %v283 = vld [vmem:[#allocation5 + $0x28] sm:$0xff]
        %v284 = vld [vmem:[#allocation5 + $0x30] sm:$0xff]
        %v285 = vld [vmem:[#allocation5 + $0x38] sm:$0xff]
        %v286 = vld [vmem:[#allocation5 + $0x40] sm:$0xff]
        %v287 = vld [vmem:[#allocation5 + $0x48] sm:$0xff]
        %v288 = vld [vmem:[#allocation5 + $0x50] sm:$0xff]
        %v289 = vld [vmem:[#allocation5 + $0x58] sm:$0xff]
        %v290 = vld [vmem:[#allocation5 + $0x60] sm:$0x7]
        %v291 = vld [vmem:[#allocation5 + $0x68] sm:$0x7]
        %vm292 = vcmask 416768
        %v294 = vsel %vm292, %v277, 0
        %vm296 = vcmask 1042432
        %v298 = vsel %vm296, %v290, 0
        %v301 = vsel %vm296, %v291, 0
        %v303 = vand.u32 %v279, 4294901760
        %304 = vmatprep.subr.mxu0 %v303
        %v305 = vand.u32 %v278, 4294901760
        %306 = vmatpush1.msra.mxu0 %v305
        %v307 = vand.u32 %v281, 4294901760
        %308 = vmatprep.subr.mxu0 %v307
        %v309 = vand.u32 %v280, 4294901760
        %310 = vmatpush1.msra.mxu0 %v309
        %v311 = vand.u32 %v283, 4294901760
        %312 = vmatprep.subr.mxu0 %v311
        %v313 = vand.u32 %v282, 4294901760
        %314 = vmatpush1.msra.mxu0 %v313
        %v315 = vand.u32 %v285, 4294901760
        %316 = vmatprep.subr.mxu0 %v315
        %v317 = vand.u32 %v284, 4294901760
        %318 = vmatpush1.msra.mxu0 %v317
        %v319 = vand.u32 %v287, 4294901760
        %320 = vmatprep.subr.mxu0 %v319
        %v321 = vand.u32 %v286, 4294901760
        %322 = vmatpush1.msra.mxu0 %v321
        %v323 = vand.u32 %v289, 4294901760
        %324 = vmatprep.subr.mxu0 %v323
        %v325 = vand.u32 %v288, 4294901760
        %326 = vmatpush1.msra.mxu0 %v325
        %v327 = vand.u32 %v301, 4294901760
        %328 = vmatprep.subr.mxu0 %v327
        %v329 = vand.u32 %v298, 4294901760
        %330 = vmatpush1.msra.mxu0 %v329
        %331 = vmatprep.subr.mxu0 0.0
        %332 = vmatpush1.msra.mxu0 0.0
        %333 = vmatprep.subr.mxu0 0.0
        %334 = vmatpush1.msra.mxu0 0.0
        %335 = vmatprep.subr.mxu0 0.0
        %336 = vmatpush1.msra.mxu0 0.0
        %337 = vmatprep.subr.mxu0 0.0
        %338 = vmatpush1.msra.mxu0 0.0
        %339 = vmatprep.subr.mxu0 0.0
        %340 = vmatpush1.msra.mxu0 0.0
        %341 = vmatprep.subr.mxu0 0.0
        %342 = vmatpush1.msra.mxu0 0.0
        %343 = vmatprep.subr.mxu0 0.0
        %344 = vmatpush1.msra.mxu0 0.0
        %345 = vmatprep.subr.mxu0 0.0
        %346 = vmatpush1.msra.mxu0 0.0
        %347 = vmatprep.subr.mxu0 0.0
        %348 = vmatpush1.msra.mxu0 0.0
        %349 = vmatprep.subr.mxu0 0.0
        %350 = vmatpush1.msra.mxu0 0.0
        %351 = vmatprep.subr.mxu0 0.0
        %352 = vmatpush1.msra.mxu0 0.0
        %353 = vmatprep.subr.mxu0 0.0
        %354 = vmatpush1.msra.mxu0 0.0
        %355 = vmatprep.subr.mxu0 0.0
        %356 = vmatpush1.msra.mxu0 0.0
        %357 = vmatprep.subr.mxu0 0.0
        %358 = vmatpush1.msra.mxu0 0.0
        %359 = vmatprep.subr.mxu0 0.0
        %360 = vmatpush1.msra.mxu0 0.0
        %361 = vmatprep.subr.mxu0 0.0
        %362 = vmatpush1.msra.mxu0 0.0
        %363 = vmatprep.subr.mxu0 0.0
        %364 = vmatpush1.msra.mxu0 0.0
        %365 = vmatprep.subr.mxu0 0.0
        %366 = vmatpush1.msra.mxu0 0.0
        %367 = vmatprep.subr.mxu0 0.0
        %368 = vmatpush1.msra.mxu0 0.0
        %369 = vmatprep.subr.mxu0 0.0
        %370 = vmatpush1.msra.mxu0 0.0
        %371 = vmatprep.subr.mxu0 0.0
        %372 = vmatpush1.msra.mxu0 0.0
        %373 = vmatprep.subr.mxu0 0.0
        %374 = vmatpush1.msra.mxu0 0.0
        %375 = vmatprep.subr.mxu0 0.0
        %376 = vmatpush1.msra.mxu0 0.0
        %377 = vmatprep.subr.mxu0 0.0
        %378 = vmatpush1.msra.mxu0 0.0
        %379 = vmatprep.subr.mxu0 0.0
        %380 = vmatpush1.msra.mxu0 0.0
        %381 = vmatprep.mubr.f32.mxu0 0.0
        %v382 = vand.u32 %v294, 4294901760
        %v383 = vsub.f32 %v294, %v382
        %v384 = vand.u32 %v383, 4294901760
        %v385 = vsub.f32 %v383, %v384
        %v386 = vand.u32 %v385, 4294901760
        %387 = vmatmul.mubr.f32.gmra.mrb[0].mxu0 %v386
        %v388 = vpop.f32.mrb[0].mxu0
        %v389 = vadd.f32 0.0, %v388
        %v390 = vpop.f32.mrb[0].mxu0
        %v391 = vadd.f32 0.0, %v390
        %392 = vdwg.mxu0
        %v393 = vand.u32 %v279, 4294901760
        %v394 = vsub.f32 %v279, %v393
        %v395 = vand.u32 %v394, 4294901760
        %v396 = vsub.f32 %v394, %v395
        %v397 = vand.u32 %v396, 4294901760
        %398 = vmatprep.subr.mxu0 %v397
        %v399 = vand.u32 %v278, 4294901760
        %v400 = vsub.f32 %v278, %v399
        %v401 = vand.u32 %v400, 4294901760
        %v402 = vsub.f32 %v400, %v401
        %v403 = vand.u32 %v402, 4294901760
        %404 = vmatpush1.msra.mxu0 %v403
        %v405 = vand.u32 %v281, 4294901760
        %v406 = vsub.f32 %v281, %v405
        %v407 = vand.u32 %v406, 4294901760
        %v408 = vsub.f32 %v406, %v407
        %v409 = vand.u32 %v408, 4294901760
        %410 = vmatprep.subr.mxu0 %v409
        %v411 = vand.u32 %v280, 4294901760
        %v412 = vsub.f32 %v280, %v411
        %v413 = vand.u32 %v412, 4294901760
        %v414 = vsub.f32 %v412, %v413
        %v415 = vand.u32 %v414, 4294901760
        %416 = vmatpush1.msra.mxu0 %v415
        %v417 = vand.u32 %v283, 4294901760
        %v418 = vsub.f32 %v283, %v417
        %v419 = vand.u32 %v418, 4294901760
        %v420 = vsub.f32 %v418, %v419
        %v421 = vand.u32 %v420, 4294901760
        %422 = vmatprep.subr.mxu0 %v421
        %v423 = vand.u32 %v282, 4294901760
        %v424 = vsub.f32 %v282, %v423
        %v425 = vand.u32 %v424, 4294901760
        %v426 = vsub.f32 %v424, %v425
        %v427 = vand.u32 %v426, 4294901760
        %428 = vmatpush1.msra.mxu0 %v427
        %v429 = vand.u32 %v285, 4294901760
        %v430 = vsub.f32 %v285, %v429
        %v431 = vand.u32 %v430, 4294901760
        %v432 = vsub.f32 %v430, %v431
        %v433 = vand.u32 %v432, 4294901760
        %434 = vmatprep.subr.mxu0 %v433
        %v435 = vand.u32 %v284, 4294901760
        %v436 = vsub.f32 %v284, %v435
        %v437 = vand.u32 %v436, 4294901760
        %v438 = vsub.f32 %v436, %v437
        %v439 = vand.u32 %v438, 4294901760
        %440 = vmatpush1.msra.mxu0 %v439
        %v441 = vand.u32 %v287, 4294901760
        %v442 = vsub.f32 %v287, %v441
        %v443 = vand.u32 %v442, 4294901760
        %v444 = vsub.f32 %v442, %v443
        %v445 = vand.u32 %v444, 4294901760
        %446 = vmatprep.subr.mxu0 %v445
        %v447 = vand.u32 %v286, 4294901760
        %v448 = vsub.f32 %v286, %v447
        %v449 = vand.u32 %v448, 4294901760
        %v450 = vsub.f32 %v448, %v449
        %v451 = vand.u32 %v450, 4294901760
        %452 = vmatpush1.msra.mxu0 %v451
        %v453 = vand.u32 %v289, 4294901760
        %v454 = vsub.f32 %v289, %v453
        %v455 = vand.u32 %v454, 4294901760
        %v456 = vsub.f32 %v454, %v455
        %v457 = vand.u32 %v456, 4294901760
        %458 = vmatprep.subr.mxu0 %v457
        %v459 = vand.u32 %v288, 4294901760
        %v460 = vsub.f32 %v288, %v459
        %v461 = vand.u32 %v460, 4294901760
        %v462 = vsub.f32 %v460, %v461
        %v463 = vand.u32 %v462, 4294901760
        %464 = vmatpush1.msra.mxu0 %v463
        %v465 = vand.u32 %v301, 4294901760
        %v466 = vsub.f32 %v301, %v465
        %v467 = vand.u32 %v466, 4294901760
        %v468 = vsub.f32 %v466, %v467
        %v469 = vand.u32 %v468, 4294901760
        %470 = vmatprep.subr.mxu0 %v469
        %v471 = vand.u32 %v298, 4294901760
        %v472 = vsub.f32 %v298, %v471
        %v473 = vand.u32 %v472, 4294901760
        %v474 = vsub.f32 %v472, %v473
        %v475 = vand.u32 %v474, 4294901760
        %476 = vmatpush1.msra.mxu0 %v475
        %477 = vmatprep.subr.mxu0 0.0
        %478 = vmatpush1.msra.mxu0 0.0
        %479 = vmatprep.subr.mxu0 0.0
        %480 = vmatpush1.msra.mxu0 0.0
        %481 = vmatprep.subr.mxu0 0.0
        %482 = vmatpush1.msra.mxu0 0.0
        %483 = vmatprep.subr.mxu0 0.0
        %484 = vmatpush1.msra.mxu0 0.0
        %485 = vmatprep.subr.mxu0 0.0
        %486 = vmatpush1.msra.mxu0 0.0
        %487 = vmatprep.subr.mxu0 0.0
        %488 = vmatpush1.msra.mxu0 0.0
        %489 = vmatprep.subr.mxu0 0.0
        %490 = vmatpush1.msra.mxu0 0.0
        %491 = vmatprep.subr.mxu0 0.0
        %492 = vmatpush1.msra.mxu0 0.0
        %493 = vmatprep.subr.mxu0 0.0
        %494 = vmatpush1.msra.mxu0 0.0
        %495 = vmatprep.subr.mxu0 0.0
        %496 = vmatpush1.msra.mxu0 0.0
        %497 = vmatprep.subr.mxu0 0.0
        %498 = vmatpush1.msra.mxu0 0.0
        %499 = vmatprep.subr.mxu0 0.0
        %500 = vmatpush1.msra.mxu0 0.0
        %501 = vmatprep.subr.mxu0 0.0
        %502 = vmatpush1.msra.mxu0 0.0
        %503 = vmatprep.subr.mxu0 0.0
        %504 = vmatpush1.msra.mxu0 0.0
        %505 = vmatprep.subr.mxu0 0.0
        %506 = vmatpush1.msra.mxu0 0.0
        %507 = vmatprep.subr.mxu0 0.0
        %508 = vmatpush1.msra.mxu0 0.0
        %509 = vmatprep.subr.mxu0 0.0
        %510 = vmatpush1.msra.mxu0 0.0
        %511 = vmatprep.subr.mxu0 0.0
        %512 = vmatpush1.msra.mxu0 0.0
        %513 = vmatprep.subr.mxu0 0.0
        %514 = vmatpush1.msra.mxu0 0.0
        %515 = vmatprep.subr.mxu0 0.0
        %516 = vmatpush1.msra.mxu0 0.0
        %517 = vmatprep.subr.mxu0 0.0
        %518 = vmatpush1.msra.mxu0 0.0
        %519 = vmatprep.subr.mxu0 0.0
        %520 = vmatpush1.msra.mxu0 0.0
        %521 = vmatprep.subr.mxu0 0.0
        %522 = vmatpush1.msra.mxu0 0.0
        %523 = vmatprep.subr.mxu0 0.0
        %524 = vmatpush1.msra.mxu0 0.0
        %525 = vmatprep.subr.mxu0 0.0
        %526 = vmatpush1.msra.mxu0 0.0
        %527 = vmatprep.mubr.f32.mxu0 0.0
        %v528 = vand.u32 %v294, 4294901760
        %529 = vmatmul.mubr.f32.gmra.mrb[0].mxu0 %v528
        %v530 = vpop.f32.mrb[0].mxu0
        %v531 = vadd.f32 %v389, %v530
        %v532 = vpop.f32.mrb[0].mxu0
        %v533 = vadd.f32 %v391, %v532
        %534 = vdwg.mxu0
        %v535 = vand.u32 %v279, 4294901760
        %v536 = vsub.f32 %v279, %v535
        %537 = vmatprep.subr.mxu0 %v536
        %v538 = vand.u32 %v278, 4294901760
        %v539 = vsub.f32 %v278, %v538
        %540 = vmatpush1.msra.mxu0 %v539
        %v541 = vand.u32 %v281, 4294901760
        %v542 = vsub.f32 %v281, %v541
        %543 = vmatprep.subr.mxu0 %v542
        %v544 = vand.u32 %v280, 4294901760
        %v545 = vsub.f32 %v280, %v544
        %546 = vmatpush1.msra.mxu0 %v545
        %v547 = vand.u32 %v283, 4294901760
        %v548 = vsub.f32 %v283, %v547
        %549 = vmatprep.subr.mxu0 %v548
        %v550 = vand.u32 %v282, 4294901760
        %v551 = vsub.f32 %v282, %v550
        %552 = vmatpush1.msra.mxu0 %v551
        %v553 = vand.u32 %v285, 4294901760
        %v554 = vsub.f32 %v285, %v553
        %555 = vmatprep.subr.mxu0 %v554
        %v556 = vand.u32 %v284, 4294901760
        %v557 = vsub.f32 %v284, %v556
        %558 = vmatpush1.msra.mxu0 %v557
        %v559 = vand.u32 %v287, 4294901760
        %v560 = vsub.f32 %v287, %v559
        %561 = vmatprep.subr.mxu0 %v560
        %v562 = vand.u32 %v286, 4294901760
        %v563 = vsub.f32 %v286, %v562
        %564 = vmatpush1.msra.mxu0 %v563
        %v565 = vand.u32 %v289, 4294901760
        %v566 = vsub.f32 %v289, %v565
        %567 = vmatprep.subr.mxu0 %v566
        %v568 = vand.u32 %v288, 4294901760
        %v569 = vsub.f32 %v288, %v568
        %570 = vmatpush1.msra.mxu0 %v569
        %v571 = vand.u32 %v301, 4294901760
        %v572 = vsub.f32 %v301, %v571
        %573 = vmatprep.subr.mxu0 %v572
        %v574 = vand.u32 %v298, 4294901760
        %v575 = vsub.f32 %v298, %v574
        %576 = vmatpush1.msra.mxu0 %v575
        %577 = vmatprep.subr.mxu0 0.0
        %578 = vmatpush1.msra.mxu0 0.0
        %579 = vmatprep.subr.mxu0 0.0
        %580 = vmatpush1.msra.mxu0 0.0
        %581 = vmatprep.subr.mxu0 0.0
        %582 = vmatpush1.msra.mxu0 0.0
        %583 = vmatprep.subr.mxu0 0.0
        %584 = vmatpush1.msra.mxu0 0.0
        %585 = vmatprep.subr.mxu0 0.0
        %586 = vmatpush1.msra.mxu0 0.0
        %587 = vmatprep.subr.mxu0 0.0
        %588 = vmatpush1.msra.mxu0 0.0
        %589 = vmatprep.subr.mxu0 0.0
        %590 = vmatpush1.msra.mxu0 0.0
        %591 = vmatprep.subr.mxu0 0.0
        %592 = vmatpush1.msra.mxu0 0.0
        %593 = vmatprep.subr.mxu0 0.0
        %594 = vmatpush1.msra.mxu0 0.0
        %595 = vmatprep.subr.mxu0 0.0
        %596 = vmatpush1.msra.mxu0 0.0
        %597 = vmatprep.subr.mxu0 0.0
        %598 = vmatpush1.msra.mxu0 0.0
        %599 = vmatprep.subr.mxu0 0.0
        %600 = vmatpush1.msra.mxu0 0.0
        %601 = vmatprep.subr.mxu0 0.0
        %602 = vmatpush1.msra.mxu0 0.0
        %603 = vmatprep.subr.mxu0 0.0
        %604 = vmatpush1.msra.mxu0 0.0
        %605 = vmatprep.subr.mxu0 0.0
        %606 = vmatpush1.msra.mxu0 0.0
        %607 = vmatprep.subr.mxu0 0.0
        %608 = vmatpush1.msra.mxu0 0.0
        %609 = vmatprep.subr.mxu0 0.0
        %610 = vmatpush1.msra.mxu0 0.0
        %611 = vmatprep.subr.mxu0 0.0
        %612 = vmatpush1.msra.mxu0 0.0
        %613 = vmatprep.subr.mxu0 0.0
        %614 = vmatpush1.msra.mxu0 0.0
        %615 = vmatprep.subr.mxu0 0.0
        %616 = vmatpush1.msra.mxu0 0.0
        %617 = vmatprep.subr.mxu0 0.0
        %618 = vmatpush1.msra.mxu0 0.0
        %619 = vmatprep.subr.mxu0 0.0
        %620 = vmatpush1.msra.mxu0 0.0
        %621 = vmatprep.subr.mxu0 0.0
        %622 = vmatpush1.msra.mxu0 0.0
        %623 = vmatprep.subr.mxu0 0.0
        %624 = vmatpush1.msra.mxu0 0.0
        %625 = vmatprep.subr.mxu0 0.0
        %626 = vmatpush1.msra.mxu0 0.0
        %627 = vmatprep.mubr.f32.mxu0 0.0
        %v628 = vand.u32 %v294, 4294901760
        %v629 = vsub.f32 %v294, %v628
        %630 = vmatmul.mubr.f32.gmra.mrb[0].mxu0 %v629
        %v631 = vpop.f32.mrb[0].mxu0
        %v632 = vadd.f32 %v531, %v631
        %v633 = vpop.f32.mrb[0].mxu0
        %v634 = vadd.f32 %v533, %v633
        %635 = vdwg.mxu0
        %v636 = vand.u32 %v279, 4294901760
        %637 = vmatprep.subr.mxu0 %v636
        %v638 = vand.u32 %v278, 4294901760
        %639 = vmatpush1.msra.mxu0 %v638
        %v640 = vand.u32 %v281, 4294901760
        %641 = vmatprep.subr.mxu0 %v640
        %v642 = vand.u32 %v280, 4294901760
        %643 = vmatpush1.msra.mxu0 %v642
        %v644 = vand.u32 %v283, 4294901760
        %645 = vmatprep.subr.mxu0 %v644
        %v646 = vand.u32 %v282, 4294901760
        %647 = vmatpush1.msra.mxu0 %v646
        %v648 = vand.u32 %v285, 4294901760
        %649 = vmatprep.subr.mxu0 %v648
        %v650 = vand.u32 %v284, 4294901760
        %651 = vmatpush1.msra.mxu0 %v650
        %v652 = vand.u32 %v287, 4294901760
        %653 = vmatprep.subr.mxu0 %v652
        %v654 = vand.u32 %v286, 4294901760
        %655 = vmatpush1.msra.mxu0 %v654
        %v656 = vand.u32 %v289, 4294901760
        %657 = vmatprep.subr.mxu0 %v656
        %v658 = vand.u32 %v288, 4294901760
        %659 = vmatpush1.msra.mxu0 %v658
        %v660 = vand.u32 %v301, 4294901760
        %661 = vmatprep.subr.mxu0 %v660
        %v662 = vand.u32 %v298, 4294901760
        %663 = vmatpush1.msra.mxu0 %v662
        %664 = vmatprep.subr.mxu0 0.0
        %665 = vmatpush1.msra.mxu0 0.0
        %666 = vmatprep.subr.mxu0 0.0
        %667 = vmatpush1.msra.mxu0 0.0
        %668 = vmatprep.subr.mxu0 0.0
        %669 = vmatpush1.msra.mxu0 0.0
        %670 = vmatprep.subr.mxu0 0.0
        %671 = vmatpush1.msra.mxu0 0.0
        %672 = vmatprep.subr.mxu0 0.0
        %673 = vmatpush1.msra.mxu0 0.0
        %674 = vmatprep.subr.mxu0 0.0
        %675 = vmatpush1.msra.mxu0 0.0
        %676 = vmatprep.subr.mxu0 0.0
        %677 = vmatpush1.msra.mxu0 0.0
        %678 = vmatprep.subr.mxu0 0.0
        %679 = vmatpush1.msra.mxu0 0.0
        %680 = vmatprep.subr.mxu0 0.0
        %681 = vmatpush1.msra.mxu0 0.0
        %682 = vmatprep.subr.mxu0 0.0
        %683 = vmatpush1.msra.mxu0 0.0
        %684 = vmatprep.subr.mxu0 0.0
        %685 = vmatpush1.msra.mxu0 0.0
        %686 = vmatprep.subr.mxu0 0.0
        %687 = vmatpush1.msra.mxu0 0.0
        %688 = vmatprep.subr.mxu0 0.0
        %689 = vmatpush1.msra.mxu0 0.0
        %690 = vmatprep.subr.mxu0 0.0
        %691 = vmatpush1.msra.mxu0 0.0
        %692 = vmatprep.subr.mxu0 0.0
        %693 = vmatpush1.msra.mxu0 0.0
        %694 = vmatprep.subr.mxu0 0.0
        %695 = vmatpush1.msra.mxu0 0.0
        %696 = vmatprep.subr.mxu0 0.0
        %697 = vmatpush1.msra.mxu0 0.0
        %698 = vmatprep.subr.mxu0 0.0
        %699 = vmatpush1.msra.mxu0 0.0
        %700 = vmatprep.subr.mxu0 0.0
        %701 = vmatpush1.msra.mxu0 0.0
        %702 = vmatprep.subr.mxu0 0.0
        %703 = vmatpush1.msra.mxu0 0.0
        %704 = vmatprep.subr.mxu0 0.0
        %705 = vmatpush1.msra.mxu0 0.0
        %706 = vmatprep.subr.mxu0 0.0
        %707 = vmatpush1.msra.mxu0 0.0
        %708 = vmatprep.subr.mxu0 0.0
        %709 = vmatpush1.msra.mxu0 0.0
        %710 = vmatprep.subr.mxu0 0.0
        %711 = vmatpush1.msra.mxu0 0.0
        %712 = vmatprep.subr.mxu0 0.0
        %713 = vmatpush1.msra.mxu0 0.0
        %714 = vmatprep.mubr.f32.mxu0 0.0
        %v715 = vand.u32 %v294, 4294901760
        %v716 = vsub.f32 %v294, %v715
        %v717 = vand.u32 %v716, 4294901760
        %718 = vmatmul.mubr.f32.gmra.mrb[0].mxu0 %v717
        %v719 = vpop.f32.mrb[0].mxu0
        %v720 = vadd.f32 %v632, %v719
        %v721 = vpop.f32.mrb[0].mxu0
        %v722 = vadd.f32 %v634, %v721
        %723 = vdwg.mxu0
        %v724 = vand.u32 %v279, 4294901760
        %v725 = vsub.f32 %v279, %v724
        %v726 = vand.u32 %v725, 4294901760
        %727 = vmatprep.subr.mxu0 %v726
        %v728 = vand.u32 %v278, 4294901760
        %v729 = vsub.f32 %v278, %v728
        %v730 = vand.u32 %v729, 4294901760
        %731 = vmatpush1.msra.mxu0 %v730
        %v732 = vand.u32 %v281, 4294901760
        %v733 = vsub.f32 %v281, %v732
        %v734 = vand.u32 %v733, 4294901760
        %735 = vmatprep.subr.mxu0 %v734
        %v736 = vand.u32 %v280, 4294901760
        %v737 = vsub.f32 %v280, %v736
        %v738 = vand.u32 %v737, 4294901760
        %739 = vmatpush1.msra.mxu0 %v738
        %v740 = vand.u32 %v283, 4294901760
        %v741 = vsub.f32 %v283, %v740
        %v742 = vand.u32 %v741, 4294901760
        %743 = vmatprep.subr.mxu0 %v742
        %v744 = vand.u32 %v282, 4294901760
        %v745 = vsub.f32 %v282, %v744
        %v746 = vand.u32 %v745, 4294901760
        %747 = vmatpush1.msra.mxu0 %v746
        %v748 = vand.u32 %v285, 4294901760
        %v749 = vsub.f32 %v285, %v748
        %v750 = vand.u32 %v749, 4294901760
        %751 = vmatprep.subr.mxu0 %v750
        %v752 = vand.u32 %v284, 4294901760
        %v753 = vsub.f32 %v284, %v752
        %v754 = vand.u32 %v753, 4294901760
        %755 = vmatpush1.msra.mxu0 %v754
        %v756 = vand.u32 %v287, 4294901760
        %v757 = vsub.f32 %v287, %v756
        %v758 = vand.u32 %v757, 4294901760
        %759 = vmatprep.subr.mxu0 %v758
        %v760 = vand.u32 %v286, 4294901760
        %v761 = vsub.f32 %v286, %v760
        %v762 = vand.u32 %v761, 4294901760
        %763 = vmatpush1.msra.mxu0 %v762
        %v764 = vand.u32 %v289, 4294901760
        %v765 = vsub.f32 %v289, %v764
        %v766 = vand.u32 %v765, 4294901760
        %767 = vmatprep.subr.mxu0 %v766
        %v768 = vand.u32 %v288, 4294901760
        %v769 = vsub.f32 %v288, %v768
        %v770 = vand.u32 %v769, 4294901760
        %771 = vmatpush1.msra.mxu0 %v770
        %v772 = vand.u32 %v301, 4294901760
        %v773 = vsub.f32 %v301, %v772
        %v774 = vand.u32 %v773, 4294901760
        %775 = vmatprep.subr.mxu0 %v774
        %v776 = vand.u32 %v298, 4294901760
        %v777 = vsub.f32 %v298, %v776
        %v778 = vand.u32 %v777, 4294901760
        %779 = vmatpush1.msra.mxu0 %v778
        %780 = vmatprep.subr.mxu0 0.0
        %781 = vmatpush1.msra.mxu0 0.0
        %782 = vmatprep.subr.mxu0 0.0
        %783 = vmatpush1.msra.mxu0 0.0
        %784 = vmatprep.subr.mxu0 0.0
        %785 = vmatpush1.msra.mxu0 0.0
        %786 = vmatprep.subr.mxu0 0.0
        %787 = vmatpush1.msra.mxu0 0.0
        %788 = vmatprep.subr.mxu0 0.0
        %789 = vmatpush1.msra.mxu0 0.0
        %790 = vmatprep.subr.mxu0 0.0
        %791 = vmatpush1.msra.mxu0 0.0
        %792 = vmatprep.subr.mxu0 0.0
        %793 = vmatpush1.msra.mxu0 0.0
        %794 = vmatprep.subr.mxu0 0.0
        %795 = vmatpush1.msra.mxu0 0.0
        %796 = vmatprep.subr.mxu0 0.0
        %797 = vmatpush1.msra.mxu0 0.0
        %798 = vmatprep.subr.mxu0 0.0
        %799 = vmatpush1.msra.mxu0 0.0
        %800 = vmatprep.subr.mxu0 0.0
        %801 = vmatpush1.msra.mxu0 0.0
        %802 = vmatprep.subr.mxu0 0.0
        %803 = vmatpush1.msra.mxu0 0.0
        %804 = vmatprep.subr.mxu0 0.0
        %805 = vmatpush1.msra.mxu0 0.0
        %806 = vmatprep.subr.mxu0 0.0
        %807 = vmatpush1.msra.mxu0 0.0
        %808 = vmatprep.subr.mxu0 0.0
        %809 = vmatpush1.msra.mxu0 0.0
        %810 = vmatprep.subr.mxu0 0.0
        %811 = vmatpush1.msra.mxu0 0.0
        %812 = vmatprep.subr.mxu0 0.0
        %813 = vmatpush1.msra.mxu0 0.0
        %814 = vmatprep.subr.mxu0 0.0
        %815 = vmatpush1.msra.mxu0 0.0
        %816 = vmatprep.subr.mxu0 0.0
        %817 = vmatpush1.msra.mxu0 0.0
        %818 = vmatprep.subr.mxu0 0.0
        %819 = vmatpush1.msra.mxu0 0.0
        %820 = vmatprep.subr.mxu0 0.0
        %821 = vmatpush1.msra.mxu0 0.0
        %822 = vmatprep.subr.mxu0 0.0
        %823 = vmatpush1.msra.mxu0 0.0
        %824 = vmatprep.subr.mxu0 0.0
        %825 = vmatpush1.msra.mxu0 0.0
        %826 = vmatprep.subr.mxu0 0.0
        %827 = vmatpush1.msra.mxu0 0.0
        %828 = vmatprep.subr.mxu0 0.0
        %829 = vmatpush1.msra.mxu0 0.0
        %830 = vmatprep.mubr.f32.mxu0 0.0
        %v831 = vand.u32 %v294, 4294901760
        %832 = vmatmul.mubr.f32.gmra.mrb[0].mxu0 %v831
        %v833 = vpop.f32.mrb[0].mxu0
        %v834 = vadd.f32 %v720, %v833
        %v835 = vpop.f32.mrb[0].mxu0
        %v836 = vadd.f32 %v722, %v835
        %837 = vdwg.mxu0
        %v838 = vand.u32 %v279, 4294901760
        %839 = vmatprep.subr.mxu0 %v838
        %v840 = vand.u32 %v278, 4294901760
        %841 = vmatpush1.msra.mxu0 %v840
        %v842 = vand.u32 %v281, 4294901760
        %843 = vmatprep.subr.mxu0 %v842
        %v844 = vand.u32 %v280, 4294901760
        %845 = vmatpush1.msra.mxu0 %v844
        %v846 = vand.u32 %v283, 4294901760
        %847 = vmatprep.subr.mxu0 %v846
        %v848 = vand.u32 %v282, 4294901760
        %849 = vmatpush1.msra.mxu0 %v848
        %v850 = vand.u32 %v285, 4294901760
        %851 = vmatprep.subr.mxu0 %v850
        %v852 = vand.u32 %v284, 4294901760
        %853 = vmatpush1.msra.mxu0 %v852
        %v854 = vand.u32 %v287, 4294901760
        %855 = vmatprep.subr.mxu0 %v854
        %v856 = vand.u32 %v286, 4294901760
        %857 = vmatpush1.msra.mxu0 %v856
        %v858 = vand.u32 %v289, 4294901760
        %859 = vmatprep.subr.mxu0 %v858
        %v860 = vand.u32 %v288, 4294901760
        %861 = vmatpush1.msra.mxu0 %v860
        %v862 = vand.u32 %v301, 4294901760
        %863 = vmatprep.subr.mxu0 %v862
        %v864 = vand.u32 %v298, 4294901760
        %865 = vmatpush1.msra.mxu0 %v864
        %866 = vmatprep.subr.mxu0 0.0
        %867 = vmatpush1.msra.mxu0 0.0
        %868 = vmatprep.subr.mxu0 0.0
        %869 = vmatpush1.msra.mxu0 0.0
        %870 = vmatprep.subr.mxu0 0.0
        %871 = vmatpush1.msra.mxu0 0.0
        %872 = vmatprep.subr.mxu0 0.0
        %873 = vmatpush1.msra.mxu0 0.0
        %874 = vmatprep.subr.mxu0 0.0
        %875 = vmatpush1.msra.mxu0 0.0
        %876 = vmatprep.subr.mxu0 0.0
        %877 = vmatpush1.msra.mxu0 0.0
        %878 = vmatprep.subr.mxu0 0.0
        %879 = vmatpush1.msra.mxu0 0.0
        %880 = vmatprep.subr.mxu0 0.0
        %881 = vmatpush1.msra.mxu0 0.0
        %882 = vmatprep.subr.mxu0 0.0
        %883 = vmatpush1.msra.mxu0 0.0
        %884 = vmatprep.subr.mxu0 0.0
        %885 = vmatpush1.msra.mxu0 0.0
        %886 = vmatprep.subr.mxu0 0.0
        %887 = vmatpush1.msra.mxu0 0.0
        %888 = vmatprep.subr.mxu0 0.0
        %889 = vmatpush1.msra.mxu0 0.0
        %890 = vmatprep.subr.mxu0 0.0
        %891 = vmatpush1.msra.mxu0 0.0
        %892 = vmatprep.subr.mxu0 0.0
        %893 = vmatpush1.msra.mxu0 0.0
        %894 = vmatprep.subr.mxu0 0.0
        %895 = vmatpush1.msra.mxu0 0.0
        %896 = vmatprep.subr.mxu0 0.0
        %897 = vmatpush1.msra.mxu0 0.0
        %898 = vmatprep.subr.mxu0 0.0
        %899 = vmatpush1.msra.mxu0 0.0
        %900 = vmatprep.subr.mxu0 0.0
        %901 = vmatpush1.msra.mxu0 0.0
        %902 = vmatprep.subr.mxu0 0.0
        %903 = vmatpush1.msra.mxu0 0.0
        %904 = vmatprep.subr.mxu0 0.0
        %905 = vmatpush1.msra.mxu0 0.0
        %906 = vmatprep.subr.mxu0 0.0
        %907 = vmatpush1.msra.mxu0 0.0
        %908 = vmatprep.subr.mxu0 0.0
        %909 = vmatpush1.msra.mxu0 0.0
        %910 = vmatprep.subr.mxu0 0.0
        %911 = vmatpush1.msra.mxu0 0.0
        %912 = vmatprep.subr.mxu0 0.0
        %913 = vmatpush1.msra.mxu0 0.0
        %914 = vmatprep.subr.mxu0 0.0
        %915 = vmatpush1.msra.mxu0 0.0
        %916 = vmatprep.mubr.f32.mxu0 0.0
        %v917 = vand.u32 %v294, 4294901760
        %918 = vmatmul.mubr.f32.gmra.mrb[0].mxu0 %v917
        %v919 = vpop.f32.mrb[0].mxu0
        %v920 = vadd.f32 %v834, %v919
        %v921 = vpop.f32.mrb[0].mxu0
        %v922 = vadd.f32 %v836, %v921
        %923 = vdwg.mxu0
        %v925 = vcombine.high %v276, %v276
        %vm926 = vcmask 31744
        %v928 = vsel %vm926, %v275, 0
        %vm930 = vcmask 1043456
        %v931 = vsel %vm930, %v276, 0
        %v933 = vsel %vm930, %v925, 0
        %v935 = vand.u32 %v933, 4294901760
        %936 = vmatprep.subr.mxu0 %v935
        %v937 = vand.u32 %v931, 4294901760
        %938 = vmatpush1.msra.mxu0 %v937
        %939 = vmatprep.subr.mxu0 0.0
        %940 = vmatpush1.msra.mxu0 0.0
        %941 = vmatprep.subr.mxu0 0.0
        %942 = vmatpush1.msra.mxu0 0.0
        %943 = vmatprep.subr.mxu0 0.0
        %944 = vmatpush1.msra.mxu0 0.0
        %945 = vmatprep.subr.mxu0 0.0
        %946 = vmatpush1.msra.mxu0 0.0
        %947 = vmatprep.subr.mxu0 0.0
        %948 = vmatpush1.msra.mxu0 0.0
        %949 = vmatprep.subr.mxu0 0.0
        %950 = vmatpush1.msra.mxu0 0.0
        %951 = vmatprep.subr.mxu0 0.0
        %952 = vmatpush1.msra.mxu0 0.0
        %953 = vmatprep.subr.mxu0 0.0
        %954 = vmatpush1.msra.mxu0 0.0
        %955 = vmatprep.subr.mxu0 0.0
        %956 = vmatpush1.msra.mxu0 0.0
        %957 = vmatprep.subr.mxu0 0.0
        %958 = vmatpush1.msra.mxu0 0.0
        %959 = vmatprep.subr.mxu0 0.0
        %960 = vmatpush1.msra.mxu0 0.0
        %961 = vmatprep.subr.mxu0 0.0
        %962 = vmatpush1.msra.mxu0 0.0
        %963 = vmatprep.subr.mxu0 0.0
        %964 = vmatpush1.msra.mxu0 0.0
        %965 = vmatprep.subr.mxu0 0.0
        %966 = vmatpush1.msra.mxu0 0.0
        %967 = vmatprep.subr.mxu0 0.0
        %968 = vmatpush1.msra.mxu0 0.0
        %969 = vmatprep.subr.mxu0 0.0
        %970 = vmatpush1.msra.mxu0 0.0
        %971 = vmatprep.subr.mxu0 0.0
        %972 = vmatpush1.msra.mxu0 0.0
        %973 = vmatprep.subr.mxu0 0.0
        %974 = vmatpush1.msra.mxu0 0.0
        %975 = vmatprep.subr.mxu0 0.0
        %976 = vmatpush1.msra.mxu0 0.0
        %977 = vmatprep.subr.mxu0 0.0
        %978 = vmatpush1.msra.mxu0 0.0
        %979 = vmatprep.subr.mxu0 0.0
        %980 = vmatpush1.msra.mxu0 0.0
        %981 = vmatprep.subr.mxu0 0.0
        %982 = vmatpush1.msra.mxu0 0.0
        %983 = vmatprep.subr.mxu0 0.0
        %984 = vmatpush1.msra.mxu0 0.0
        %985 = vmatprep.subr.mxu0 0.0
        %986 = vmatpush1.msra.mxu0 0.0
        %987 = vmatprep.subr.mxu0 0.0
        %988 = vmatpush1.msra.mxu0 0.0
        %989 = vmatprep.subr.mxu0 0.0
        %990 = vmatpush1.msra.mxu0 0.0
        %991 = vmatprep.subr.mxu0 0.0
        %992 = vmatpush1.msra.mxu0 0.0
        %993 = vmatprep.subr.mxu0 0.0
        %994 = vmatpush1.msra.mxu0 0.0
        %995 = vmatprep.subr.mxu0 0.0
        %996 = vmatpush1.msra.mxu0 0.0
        %997 = vmatprep.subr.mxu0 0.0
        %998 = vmatpush1.msra.mxu0 0.0
        %999 = vmatprep.subr.mxu0 0.0
        %1000 = vmatpush1.msra.mxu0 0.0
        %1001 = vmatprep.mubr.f32.mxu0 0.0
        %v1002 = vand.u32 %v928, 4294901760
        %v1003 = vsub.f32 %v928, %v1002
        %v1004 = vand.u32 %v1003, 4294901760
        %v1005 = vsub.f32 %v1003, %v1004
        %v1006 = vand.u32 %v1005, 4294901760
        %1007 = vmatmul.mubr.f32.gmra.mrb[0].mxu0 %v1006
        %v1008 = vpop.f32.mrb[0].mxu0
        %v1009 = vadd.f32 %v920, %v1008
        %v1010 = vpop.f32.mrb[0].mxu0
        %v1011 = vadd.f32 %v922, %v1010
        %1012 = vdwg.mxu0
        %v1013 = vand.u32 %v933, 4294901760
        %v1014 = vsub.f32 %v933, %v1013
        %v1015 = vand.u32 %v1014, 4294901760
        %v1016 = vsub.f32 %v1014, %v1015
        %v1017 = vand.u32 %v1016, 4294901760
        %1018 = vmatprep.subr.mxu0 %v1017
        %v1019 = vand.u32 %v931, 4294901760
        %v1020 = vsub.f32 %v931, %v1019
        %v1021 = vand.u32 %v1020, 4294901760
        %v1022 = vsub.f32 %v1020, %v1021
        %v1023 = vand.u32 %v1022, 4294901760
        %1024 = vmatpush1.msra.mxu0 %v1023
        %1025 = vmatprep.subr.mxu0 0.0
        %1026 = vmatpush1.msra.mxu0 0.0
        %1027 = vmatprep.subr.mxu0 0.0
        %1028 = vmatpush1.msra.mxu0 0.0
        %1029 = vmatprep.subr.mxu0 0.0
        %1030 = vmatpush1.msra.mxu0 0.0
        %1031 = vmatprep.subr.mxu0 0.0
        %1032 = vmatpush1.msra.mxu0 0.0
        %1033 = vmatprep.subr.mxu0 0.0
        %1034 = vmatpush1.msra.mxu0 0.0
        %1035 = vmatprep.subr.mxu0 0.0
        %1036 = vmatpush1.msra.mxu0 0.0
        %1037 = vmatprep.subr.mxu0 0.0
        %1038 = vmatpush1.msra.mxu0 0.0
        %1039 = vmatprep.subr.mxu0 0.0
        %1040 = vmatpush1.msra.mxu0 0.0
        %1041 = vmatprep.subr.mxu0 0.0
        %1042 = vmatpush1.msra.mxu0 0.0
        %1043 = vmatprep.subr.mxu0 0.0
        %1044 = vmatpush1.msra.mxu0 0.0
        %1045 = vmatprep.subr.mxu0 0.0
        %1046 = vmatpush1.msra.mxu0 0.0
        %1047 = vmatprep.subr.mxu0 0.0
        %1048 = vmatpush1.msra.mxu0 0.0
        %1049 = vmatprep.subr.mxu0 0.0
        %1050 = vmatpush1.msra.mxu0 0.0
        %1051 = vmatprep.subr.mxu0 0.0
        %1052 = vmatpush1.msra.mxu0 0.0
        %1053 = vmatprep.subr.mxu0 0.0
        %1054 = vmatpush1.msra.mxu0 0.0
        %1055 = vmatprep.subr.mxu0 0.0
        %1056 = vmatpush1.msra.mxu0 0.0
        %1057 = vmatprep.subr.mxu0 0.0
        %1058 = vmatpush1.msra.mxu0 0.0
        %1059 = vmatprep.subr.mxu0 0.0
        %1060 = vmatpush1.msra.mxu0 0.0
        %1061 = vmatprep.subr.mxu0 0.0
        %1062 = vmatpush1.msra.mxu0 0.0
        %1063 = vmatprep.subr.mxu0 0.0
        %1064 = vmatpush1.msra.mxu0 0.0
        %1065 = vmatprep.subr.mxu0 0.0
        %1066 = vmatpush1.msra.mxu0 0.0
        %1067 = vmatprep.subr.mxu0 0.0
        %1068 = vmatpush1.msra.mxu0 0.0
        %1069 = vmatprep.subr.mxu0 0.0
        %1070 = vmatpush1.msra.mxu0 0.0
        %1071 = vmatprep.subr.mxu0 0.0
        %1072 = vmatpush1.msra.mxu0 0.0
        %1073 = vmatprep.subr.mxu0 0.0
        %1074 = vmatpush1.msra.mxu0 0.0
        %1075 = vmatprep.subr.mxu0 0.0
        %1076 = vmatpush1.msra.mxu0 0.0
        %1077 = vmatprep.subr.mxu0 0.0
        %1078 = vmatpush1.msra.mxu0 0.0
        %1079 = vmatprep.subr.mxu0 0.0
        %1080 = vmatpush1.msra.mxu0 0.0
        %1081 = vmatprep.subr.mxu0 0.0
        %1082 = vmatpush1.msra.mxu0 0.0
        %1083 = vmatprep.subr.mxu0 0.0
        %1084 = vmatpush1.msra.mxu0 0.0
        %1085 = vmatprep.subr.mxu0 0.0
        %1086 = vmatpush1.msra.mxu0 0.0
        %1087 = vmatprep.mubr.f32.mxu0 0.0
        %v1088 = vand.u32 %v928, 4294901760
        %1089 = vmatmul.mubr.f32.gmra.mrb[0].mxu0 %v1088
        %v1090 = vpop.f32.mrb[0].mxu0
        %v1091 = vadd.f32 %v1009, %v1090
        %v1092 = vpop.f32.mrb[0].mxu0
        %v1093 = vadd.f32 %v1011, %v1092
        %1094 = vdwg.mxu0
        %v1095 = vand.u32 %v933, 4294901760
        %v1096 = vsub.f32 %v933, %v1095
        %1097 = vmatprep.subr.mxu0 %v1096
        %v1098 = vand.u32 %v931, 4294901760
        %v1099 = vsub.f32 %v931, %v1098
        %1100 = vmatpush1.msra.mxu0 %v1099
        %1101 = vmatprep.subr.mxu0 0.0
        %1102 = vmatpush1.msra.mxu0 0.0
        %1103 = vmatprep.subr.mxu0 0.0
        %1104 = vmatpush1.msra.mxu0 0.0
        %1105 = vmatprep.subr.mxu0 0.0
        %1106 = vmatpush1.msra.mxu0 0.0
        %1107 = vmatprep.subr.mxu0 0.0
        %1108 = vmatpush1.msra.mxu0 0.0
        %1109 = vmatprep.subr.mxu0 0.0
        %1110 = vmatpush1.msra.mxu0 0.0
        %1111 = vmatprep.subr.mxu0 0.0
        %1112 = vmatpush1.msra.mxu0 0.0
        %1113 = vmatprep.subr.mxu0 0.0
        %1114 = vmatpush1.msra.mxu0 0.0
        %1115 = vmatprep.subr.mxu0 0.0
        %1116 = vmatpush1.msra.mxu0 0.0
        %1117 = vmatprep.subr.mxu0 0.0
        %1118 = vmatpush1.msra.mxu0 0.0
        %1119 = vmatprep.subr.mxu0 0.0
        %1120 = vmatpush1.msra.mxu0 0.0
        %1121 = vmatprep.subr.mxu0 0.0
        %1122 = vmatpush1.msra.mxu0 0.0
        %1123 = vmatprep.subr.mxu0 0.0
        %1124 = vmatpush1.msra.mxu0 0.0
        %1125 = vmatprep.subr.mxu0 0.0
        %1126 = vmatpush1.msra.mxu0 0.0
        %1127 = vmatprep.subr.mxu0 0.0
        %1128 = vmatpush1.msra.mxu0 0.0
        %1129 = vmatprep.subr.mxu0 0.0
        %1130 = vmatpush1.msra.mxu0 0.0
        %1131 = vmatprep.subr.mxu0 0.0
        %1132 = vmatpush1.msra.mxu0 0.0
        %1133 = vmatprep.subr.mxu0 0.0
        %1134 = vmatpush1.msra.mxu0 0.0
        %1135 = vmatprep.subr.mxu0 0.0
        %1136 = vmatpush1.msra.mxu0 0.0
        %1137 = vmatprep.subr.mxu0 0.0
        %1138 = vmatpush1.msra.mxu0 0.0
        %1139 = vmatprep.subr.mxu0 0.0
        %1140 = vmatpush1.msra.mxu0 0.0
        %1141 = vmatprep.subr.mxu0 0.0
        %1142 = vmatpush1.msra.mxu0 0.0
        %1143 = vmatprep.subr.mxu0 0.0
        %1144 = vmatpush1.msra.mxu0 0.0
        %1145 = vmatprep.subr.mxu0 0.0
        %1146 = vmatpush1.msra.mxu0 0.0
        %1147 = vmatprep.subr.mxu0 0.0
        %1148 = vmatpush1.msra.mxu0 0.0
        %1149 = vmatprep.subr.mxu0 0.0
        %1150 = vmatpush1.msra.mxu0 0.0
        %1151 = vmatprep.subr.mxu0 0.0
        %1152 = vmatpush1.msra.mxu0 0.0
        %1153 = vmatprep.subr.mxu0 0.0
        %1154 = vmatpush1.msra.mxu0 0.0
        %1155 = vmatprep.subr.mxu0 0.0
        %1156 = vmatpush1.msra.mxu0 0.0
        %1157 = vmatprep.subr.mxu0 0.0
        %1158 = vmatpush1.msra.mxu0 0.0
        %1159 = vmatprep.subr.mxu0 0.0
        %1160 = vmatpush1.msra.mxu0 0.0
        %1161 = vmatprep.subr.mxu0 0.0
        %1162 = vmatpush1.msra.mxu0 0.0
        %1163 = vmatprep.mubr.f32.mxu0 0.0
        %v1164 = vand.u32 %v928, 4294901760
        %v1165 = vsub.f32 %v928, %v1164
        %1166 = vmatmul.mubr.f32.gmra.mrb[0].mxu0 %v1165
        %v1167 = vpop.f32.mrb[0].mxu0
        %v1168 = vadd.f32 %v1091, %v1167
        %v1169 = vpop.f32.mrb[0].mxu0
        %v1170 = vadd.f32 %v1093, %v1169
        %1171 = vdwg.mxu0
        %v1172 = vand.u32 %v933, 4294901760
        %1173 = vmatprep.subr.mxu0 %v1172
        %v1174 = vand.u32 %v931, 4294901760
        %1175 = vmatpush1.msra.mxu0 %v1174
        %1176 = vmatprep.subr.mxu0 0.0
        %1177 = vmatpush1.msra.mxu0 0.0
        %1178 = vmatprep.subr.mxu0 0.0
        %1179 = vmatpush1.msra.mxu0 0.0
        %1180 = vmatprep.subr.mxu0 0.0
        %1181 = vmatpush1.msra.mxu0 0.0
        %1182 = vmatprep.subr.mxu0 0.0
        %1183 = vmatpush1.msra.mxu0 0.0
        %1184 = vmatprep.subr.mxu0 0.0
        %1185 = vmatpush1.msra.mxu0 0.0
        %1186 = vmatprep.subr.mxu0 0.0
        %1187 = vmatpush1.msra.mxu0 0.0
        %1188 = vmatprep.subr.mxu0 0.0
        %1189 = vmatpush1.msra.mxu0 0.0
        %1190 = vmatprep.subr.mxu0 0.0
        %1191 = vmatpush1.msra.mxu0 0.0
        %1192 = vmatprep.subr.mxu0 0.0
        %1193 = vmatpush1.msra.mxu0 0.0
        %1194 = vmatprep.subr.mxu0 0.0
        %1195 = vmatpush1.msra.mxu0 0.0
        %1196 = vmatprep.subr.mxu0 0.0
        %1197 = vmatpush1.msra.mxu0 0.0
        %1198 = vmatprep.subr.mxu0 0.0
        %1199 = vmatpush1.msra.mxu0 0.0
        %1200 = vmatprep.subr.mxu0 0.0
        %1201 = vmatpush1.msra.mxu0 0.0
        %1202 = vmatprep.subr.mxu0 0.0
        %1203 = vmatpush1.msra.mxu0 0.0
        %1204 = vmatprep.subr.mxu0 0.0
        %1205 = vmatpush1.msra.mxu0 0.0
        %1206 = vmatprep.subr.mxu0 0.0
        %1207 = vmatpush1.msra.mxu0 0.0
        %1208 = vmatprep.subr.mxu0 0.0
        %1209 = vmatpush1.msra.mxu0 0.0
        %1210 = vmatprep.subr.mxu0 0.0
        %1211 = vmatpush1.msra.mxu0 0.0
        %1212 = vmatprep.subr.mxu0 0.0
        %1213 = vmatpush1.msra.mxu0 0.0
        %1214 = vmatprep.subr.mxu0 0.0
        %1215 = vmatpush1.msra.mxu0 0.0
        %1216 = vmatprep.subr.mxu0 0.0
        %1217 = vmatpush1.msra.mxu0 0.0
        %1218 = vmatprep.subr.mxu0 0.0
        %1219 = vmatpush1.msra.mxu0 0.0
        %1220 = vmatprep.subr.mxu0 0.0
        %1221 = vmatpush1.msra.mxu0 0.0
        %1222 = vmatprep.subr.mxu0 0.0
        %1223 = vmatpush1.msra.mxu0 0.0
        %1224 = vmatprep.subr.mxu0 0.0
        %1225 = vmatpush1.msra.mxu0 0.0
        %1226 = vmatprep.subr.mxu0 0.0
        %1227 = vmatpush1.msra.mxu0 0.0
        %1228 = vmatprep.subr.mxu0 0.0
        %1229 = vmatpush1.msra.mxu0 0.0
        %1230 = vmatprep.subr.mxu0 0.0
        %1231 = vmatpush1.msra.mxu0 0.0
        %1232 = vmatprep.subr.mxu0 0.0
        %1233 = vmatpush1.msra.mxu0 0.0
        %1234 = vmatprep.subr.mxu0 0.0
        %1235 = vmatpush1.msra.mxu0 0.0
        %1236 = vmatprep.subr.mxu0 0.0
        %1237 = vmatpush1.msra.mxu0 0.0
        %1238 = vmatprep.mubr.f32.mxu0 0.0
        %v1239 = vand.u32 %v928, 4294901760
        %v1240 = vsub.f32 %v928, %v1239
        %v1241 = vand.u32 %v1240, 4294901760
        %1242 = vmatmul.mubr.f32.gmra.mrb[0].mxu0 %v1241
        %v1243 = vpop.f32.mrb[0].mxu0
        %v1244 = vadd.f32 %v1168, %v1243
        %v1245 = vpop.f32.mrb[0].mxu0
        %v1246 = vadd.f32 %v1170, %v1245
        %1247 = vdwg.mxu0
        %v1248 = vand.u32 %v933, 4294901760
        %v1249 = vsub.f32 %v933, %v1248
        %v1250 = vand.u32 %v1249, 4294901760
        %1251 = vmatprep.subr.mxu0 %v1250
        %v1252 = vand.u32 %v931, 4294901760
        %v1253 = vsub.f32 %v931, %v1252
        %v1254 = vand.u32 %v1253, 4294901760
        %1255 = vmatpush1.msra.mxu0 %v1254
        %1256 = vmatprep.subr.mxu0 0.0
        %1257 = vmatpush1.msra.mxu0 0.0
        %1258 = vmatprep.subr.mxu0 0.0
        %1259 = vmatpush1.msra.mxu0 0.0
        %1260 = vmatprep.subr.mxu0 0.0
        %1261 = vmatpush1.msra.mxu0 0.0
        %1262 = vmatprep.subr.mxu0 0.0
        %1263 = vmatpush1.msra.mxu0 0.0
        %1264 = vmatprep.subr.mxu0 0.0
        %1265 = vmatpush1.msra.mxu0 0.0
        %1266 = vmatprep.subr.mxu0 0.0
        %1267 = vmatpush1.msra.mxu0 0.0
        %1268 = vmatprep.subr.mxu0 0.0
        %1269 = vmatpush1.msra.mxu0 0.0
        %1270 = vmatprep.subr.mxu0 0.0
        %1271 = vmatpush1.msra.mxu0 0.0
        %1272 = vmatprep.subr.mxu0 0.0
        %1273 = vmatpush1.msra.mxu0 0.0
        %1274 = vmatprep.subr.mxu0 0.0
        %1275 = vmatpush1.msra.mxu0 0.0
        %1276 = vmatprep.subr.mxu0 0.0
        %1277 = vmatpush1.msra.mxu0 0.0
        %1278 = vmatprep.subr.mxu0 0.0
        %1279 = vmatpush1.msra.mxu0 0.0
        %1280 = vmatprep.subr.mxu0 0.0
        %1281 = vmatpush1.msra.mxu0 0.0
        %1282 = vmatprep.subr.mxu0 0.0
        %1283 = vmatpush1.msra.mxu0 0.0
        %1284 = vmatprep.subr.mxu0 0.0
        %1285 = vmatpush1.msra.mxu0 0.0
        %1286 = vmatprep.subr.mxu0 0.0
        %1287 = vmatpush1.msra.mxu0 0.0
        %1288 = vmatprep.subr.mxu0 0.0
        %1289 = vmatpush1.msra.mxu0 0.0
        %1290 = vmatprep.subr.mxu0 0.0
        %1291 = vmatpush1.msra.mxu0 0.0
        %1292 = vmatprep.subr.mxu0 0.0
        %1293 = vmatpush1.msra.mxu0 0.0
        %1294 = vmatprep.subr.mxu0 0.0
        %1295 = vmatpush1.msra.mxu0 0.0
        %1296 = vmatprep.subr.mxu0 0.0
        %1297 = vmatpush1.msra.mxu0 0.0
        %1298 = vmatprep.subr.mxu0 0.0
        %1299 = vmatpush1.msra.mxu0 0.0
        %1300 = vmatprep.subr.mxu0 0.0
        %1301 = vmatpush1.msra.mxu0 0.0
        %1302 = vmatprep.subr.mxu0 0.0
        %1303 = vmatpush1.msra.mxu0 0.0
        %1304 = vmatprep.subr.mxu0 0.0
        %1305 = vmatpush1.msra.mxu0 0.0
        %1306 = vmatprep.subr.mxu0 0.0
        %1307 = vmatpush1.msra.mxu0 0.0
        %1308 = vmatprep.subr.mxu0 0.0
        %1309 = vmatpush1.msra.mxu0 0.0
        %1310 = vmatprep.subr.mxu0 0.0
        %1311 = vmatpush1.msra.mxu0 0.0
        %1312 = vmatprep.subr.mxu0 0.0
        %1313 = vmatpush1.msra.mxu0 0.0
        %1314 = vmatprep.subr.mxu0 0.0
        %1315 = vmatpush1.msra.mxu0 0.0
        %1316 = vmatprep.subr.mxu0 0.0
        %1317 = vmatpush1.msra.mxu0 0.0
        %1318 = vmatprep.mubr.f32.mxu0 0.0
        %v1319 = vand.u32 %v928, 4294901760
        %1320 = vmatmul.mubr.f32.gmra.mrb[0].mxu0 %v1319
        %v1321 = vpop.f32.mrb[0].mxu0
        %v1322 = vadd.f32 %v1244, %v1321
        %v1323 = vpop.f32.mrb[0].mxu0
        %v1324 = vadd.f32 %v1246, %v1323
        %1325 = vdwg.mxu0
        %v1326 = vand.u32 %v933, 4294901760
        %1327 = vmatprep.subr.mxu0 %v1326
        %v1328 = vand.u32 %v931, 4294901760
        %1329 = vmatpush1.msra.mxu0 %v1328
        %1330 = vmatprep.subr.mxu0 0.0
        %1331 = vmatpush1.msra.mxu0 0.0
        %1332 = vmatprep.subr.mxu0 0.0
        %1333 = vmatpush1.msra.mxu0 0.0
        %1334 = vmatprep.subr.mxu0 0.0
        %1335 = vmatpush1.msra.mxu0 0.0
        %1336 = vmatprep.subr.mxu0 0.0
        %1337 = vmatpush1.msra.mxu0 0.0
        %1338 = vmatprep.subr.mxu0 0.0
        %1339 = vmatpush1.msra.mxu0 0.0
        %1340 = vmatprep.subr.mxu0 0.0
        %1341 = vmatpush1.msra.mxu0 0.0
        %1342 = vmatprep.subr.mxu0 0.0
        %1343 = vmatpush1.msra.mxu0 0.0
        %1344 = vmatprep.subr.mxu0 0.0
        %1345 = vmatpush1.msra.mxu0 0.0
        %1346 = vmatprep.subr.mxu0 0.0
        %1347 = vmatpush1.msra.mxu0 0.0
        %1348 = vmatprep.subr.mxu0 0.0
        %1349 = vmatpush1.msra.mxu0 0.0
        %1350 = vmatprep.subr.mxu0 0.0
        %1351 = vmatpush1.msra.mxu0 0.0
        %1352 = vmatprep.subr.mxu0 0.0
        %1353 = vmatpush1.msra.mxu0 0.0
        %1354 = vmatprep.subr.mxu0 0.0
        %1355 = vmatpush1.msra.mxu0 0.0
        %1356 = vmatprep.subr.mxu0 0.0
        %1357 = vmatpush1.msra.mxu0 0.0
        %1358 = vmatprep.subr.mxu0 0.0
        %1359 = vmatpush1.msra.mxu0 0.0
        %1360 = vmatprep.subr.mxu0 0.0
        %1361 = vmatpush1.msra.mxu0 0.0
        %1362 = vmatprep.subr.mxu0 0.0
        %1363 = vmatpush1.msra.mxu0 0.0
        %1364 = vmatprep.subr.mxu0 0.0
        %1365 = vmatpush1.msra.mxu0 0.0
        %1366 = vmatprep.subr.mxu0 0.0
        %1367 = vmatpush1.msra.mxu0 0.0
        %1368 = vmatprep.subr.mxu0 0.0
        %1369 = vmatpush1.msra.mxu0 0.0
        %1370 = vmatprep.subr.mxu0 0.0
        %1371 = vmatpush1.msra.mxu0 0.0
        %1372 = vmatprep.subr.mxu0 0.0
        %1373 = vmatpush1.msra.mxu0 0.0
        %1374 = vmatprep.subr.mxu0 0.0
        %1375 = vmatpush1.msra.mxu0 0.0
        %1376 = vmatprep.subr.mxu0 0.0
        %1377 = vmatpush1.msra.mxu0 0.0
        %1378 = vmatprep.subr.mxu0 0.0
        %1379 = vmatpush1.msra.mxu0 0.0
        %1380 = vmatprep.subr.mxu0 0.0
        %1381 = vmatpush1.msra.mxu0 0.0
        %1382 = vmatprep.subr.mxu0 0.0
        %1383 = vmatpush1.msra.mxu0 0.0
        %1384 = vmatprep.subr.mxu0 0.0
        %1385 = vmatpush1.msra.mxu0 0.0
        %1386 = vmatprep.subr.mxu0 0.0
        %1387 = vmatpush1.msra.mxu0 0.0
        %1388 = vmatprep.subr.mxu0 0.0
        %1389 = vmatpush1.msra.mxu0 0.0
        %1390 = vmatprep.subr.mxu0 0.0
        %1391 = vmatpush1.msra.mxu0 0.0
        %1392 = vmatprep.mubr.f32.mxu0 0.0
        %v1393 = vand.u32 %v928, 4294901760
        %1394 = vmatmul.mubr.f32.gmra.mrb[0].mxu0 %v1393
        %v1395 = vpop.f32.mrb[0].mxu0
        %v1396 = vadd.f32 %v1322, %v1395
        %v1397 = vpop.f32.mrb[0].mxu0
        %v1398 = vadd.f32 %v1324, %v1397
        %1399 = vdwg.mxu0
        %v1400 = vmax.f32 %v1396, 0.0
        %v1401 = vmax.f32 %v1398, 0.0
        %1402 = vst [vmem:[%s267] sm:$0xff] %v1400
        %1403 = vst [vmem:[%s267 + $0x8] sm:$0xff] %v1401
        %s1404 = sand.u32 %s145, 1
        %s1405 = scalar_lea.sflag [#allocation4], %s1404
        %s1406 = sand.u32 %s145, 1
        %s1407 = smul.addr %s1406, 16
        %s1408 = scalar_lea.vmem [#allocation7], %s1407
        // Predicated region
        $region45: #{tpu_custom_call.1} parent=35 // pred_check
          %p1409 = pneg %p155
        $region46: #{tpu_custom_call.1} parent=35 // pred_check_branch
          %1411 = sbr.rel (%p1409) target = $region48
        $region47: #{tpu_custom_call.1} parent=35 // pred_region
          %s1412 = smul.u32 2, %s27
          %s1414 = ssub.s32 256, 256
          %1415 = vsyncadd %s1405, %s1414
          %s1416 = smul.addr %s26, 2
          %s1417 = sadd.s32 %s1412, %s1416
          %s1418 = smul.addr %s1417, 128
          %s1419 = scalar_lea.hbm %s4, %s1418
          %s1421 = sshll.u32 %s1408, 4
          %s1422 = int_to_ptr.vmem [resolvable:$true] %s1421
          %1424 = dma.vmem_to_hbm [thread:$0]  %s1422, 256, %s1419, %s1405
        $region48: #{tpu_custom_call.1} parent=35 // pred_fallthru
          _
      $region36: #{tpu_custom_call.1} parent=5 // pred_fallthru
        _
      %p1425 = scmp.le.s32.totalorder 2, %s17
      // Predicated region
      $region49: #{tpu_custom_call.1} parent=5 // pred_check
        %p1426 = pneg %p1425
      $region50: #{tpu_custom_call.1} parent=5 // pred_check_branch
        %1428 = sbr.rel (%p1426) target = $region52
      $region51: #{tpu_custom_call.1} parent=5 // pred_region
        %s1429 = ssub.s32 %s17, 2
        // Predicated region
        $region53: #{tpu_custom_call.1} parent=51 // pred_check
          %p1430 = pneg %p161
        $region54: #{tpu_custom_call.1} parent=51 // pred_check_branch
          %1432 = sbr.rel (%p1430) target = $region56
        $region55: #{tpu_custom_call.1} parent=51 // pred_region
          %s1433 = sand.u32 %s146, 1
          %s1434 = scalar_lea.sflag [#allocation4], %s1433
          %s1435 = sand.u32 %s146, 1
          %s1436 = smul.addr %s1435, 16
          %s1437 = scalar_lea.vmem [#allocation7], %s1436
          %1438 = dma.done %s1434, 256
        $region56: #{tpu_custom_call.1} parent=51 // pred_fallthru
          _
      $region52: #{tpu_custom_call.1} parent=5 // pred_fallthru
        _
    $region6: #{tpu_custom_call.1} parent=1 // loop_footer
      %s21 = sadd.s32 1, %s17
    $region7: #{tpu_custom_call.1} parent=1 // loop_footer_branch
      %16 = sbr.rel target = $region3
    $region8: #{tpu_custom_call.1} parent=1 // loop_exit
      _
    %1439 = vsyncpa [#allocation3], 1
    %s1440 = scalar_lea.sflag [#allocation3], 1
    %1441 = vsyncpa %s1440, 1
    %1442 = vsyncpa [#allocation6], 1
    %1443 = vsyncpa [#allocation4], 1
    %s1444 = scalar_lea.sflag [#allocation4], 1
    %1445 = vsyncpa %s1444, 1

// kernel: tpu_custom_call.1
$region0: #{tpu_custom_call.1}
  #allocation0 [shape = 'u32[]', space=smem, size = 0x4, offset = 0x4, fixed_abs, tag = 'smem constant byte address 0x4 - core index']
  #allocation1 [shape = 'u32[144,128]{1,0:T(1,128)}', space=vmem, size = 0x12000, scoped, tag = 'internal scratch']
  %s0 = inlined_call_operand.hbm [shape: f32[2,4,256], index: 0, kind: input, shape index: {}]
  %s1 = inlined_call_operand.vmem [shape: f32[8,4], index: 1, kind: input, shape index: {}]
  %s2 = inlined_call_operand.hbm [shape: f32[51,256], index: 2, kind: input, shape index: {}]
  %s3 = inlined_call_operand.vmem [shape: f32[2,8,51], index: 3, kind: input, shape index: {}]
  %s4 = inlined_call_operand.hbm [shape: f32[2,8,256], index: 4, kind: output, shape index: {}]
  %s5 = sld [smem:[#allocation0]]
  $region57: #{tpu_custom_call.1} parent=0
    _
  %s7 = ssub.s32 1, %s5
  %s8 = scalar_select 0, %s7, %s5
  $region1: #{tpu_custom_call.1} parent=0
    #allocation2 [shape = 'u8[8192]{0}', space=vmem, size = 0x2000, scoped, tag = 'input window, operand 0']
    #allocation3 [shape = 's32[2]{0}', space=sflag, size = 0x8, scoped, tag = 'scoped memory for tpu_custom_call.1']
    #allocation4 [shape = 's32[2]{0}', space=sflag, size = 0x8, scoped, tag = 'scoped memory for tpu_custom_call.1']
    #allocation5 [shape = 'u8[57344]{0}', space=vmem, size = 0xe000, scoped, tag = 'input window, operand 2, single buffered']
    #allocation6 [shape = 's32[1]{0}', space=sflag, size = 0x4, scoped, tag = 'scoped memory for tpu_custom_call.1']
    #allocation7 [shape = 'u8[16384]{0}', space=vmem, size = 0x4000, scoped, tag = 'output window, operand 0']
    %9 = vsyncpa [#allocation3], 0
    %s10 = scalar_lea.sflag [#allocation3], 1
    %11 = vsyncpa %s10, 0
    %12 = vsyncpa [#allocation6], 0
    %13 = vsyncpa [#allocation4], 0
    %s14 = scalar_lea.sflag [#allocation4], 1
    %15 = vsyncpa %s14, 0
    loop: start=0, step=1, limit=4
    $region2: #{tpu_custom_call.1} parent=1 // loop_pre_header
      _
    $region3: #{tpu_custom_call.1} parent=1 // loop_header
      %s17 = sphi 0, %s21
      %p18 = scmp.ge.s32.totalorder %s17, 4
      %s24 = sphi 0, %s36
      %s25 = sphi 0, %s32
      %s26 = sphi 0, %s24
      %s27 = sphi 0, %s25
      %s28 = sphi 0, %s26
      %s29 = sphi 0, %s27
      %s41 = sphi 0, %s43
      %s44 = sphi 0, %s41
      %s45 = sphi 0, %s44
      %s61 = sphi 0, %s45
      %s65 = sphi 0, %s65
      %s67 = sphi 0, %s65
      %s68 = sphi 0, %s67
      %s82 = sphi 0, %s68
      %s88 = sphi 0, %s90
      %s91 = sphi 0, %s88
      %s92 = sphi 0, %s91
      %s108 = sphi 0, %s92
      %s114 = sphi 0, %s116
      %s117 = sphi 0, %s114
      %s118 = sphi 0, %s117
      %s134 = sphi 0, %s118
      %s142 = sphi 0, %s144
      %s145 = sphi 0, %s142
      %s146 = sphi 0, %s145
      %s162 = sphi 0, %s146
    $region4: #{tpu_custom_call.1} parent=1 // loop_header_branch
      %20 = sbr.rel (%p18) target = $region8
    $region5: #{tpu_custom_call.1} parent=1 // loop_body
      %s22 = ssub.s32 %s17, 1
      %s23 = ssub.s32 %s17, 2
      %s30 = sadd.s32 1, %s25
      %p31 = scmp.ge.s32.totalorder %s30, 1
      %s32 = scalar_select %p31, 0, %s30
      %s33 = sadd.s32 1, %s24
      %s34 = scalar_select %p31, %s33, %s24
      %p35 = scmp.ge.s32.totalorder %s34, 2
      %s36 = scalar_select %p35, 0, %s34
      %s37 = ssub.s32 %s24, %s36
      %s38 = ssub.s32 %s25, %s32
      %s39 = sor.u32 %s37, %s38
      %p40 = scmp.eq.s32.totalorder %s39, 0
      %s42 = sadd.s32 %s41, 1
      %s43 = scalar_select %p40, %s41, %s42
      %p46 = pneg %p40
      %p47 = scmp.eq.s32.totalorder %s17, 1
      %p48 = por %p46, %p47
      %p49 = scmp.ne.s32.totalorder %s41, %s44
      %p50 = scmp.eq.s32.totalorder %s17, 0
      %p51 = por %p49, %p50
      %p52 = scmp.ne.s32.totalorder %s41, %s44
      %p53 = scmp.eq.s32.totalorder %s22, 1
      %p54 = por %p52, %p53
      %p55 = scmp.ne.s32.totalorder %s44, %s45
      %p56 = scmp.eq.s32.totalorder %s22, 0
      %p57 = por %p55, %p56
      %p58 = scmp.ne.s32.totalorder %s44, %s45
      %p59 = scmp.eq.s32.totalorder %s23, 1
      %p60 = por %p58, %p59
      %p62 = scmp.ne.s32.totalorder %s45, %s61
      %p63 = scmp.eq.s32.totalorder %s23, 0
      %p64 = por %p62, %p63
      %s66 = sadd.s32 %s65, 1
      %p69 = scmp.eq.s32.totalorder %s17, 1
      %p70 = scmp.ne.s32.totalorder %s65, %s67
      %p71 = scmp.eq.s32.totalorder %s17, 0
      %p72 = por %p70, %p71
      %p73 = scmp.ne.s32.totalorder %s65, %s67
      %p74 = scmp.eq.s32.totalorder %s22, 1
      %p75 = por %p73, %p74
      %p76 = scmp.ne.s32.totalorder %s67, %s68
      %p77 = scmp.eq.s32.totalorder %s22, 0
      %p78 = por %p76, %p77
      %p79 = scmp.ne.s32.totalorder %s67, %s68
      %p80 = scmp.eq.s32.totalorder %s23, 1
      %p81 = por %p79, %p80
      %p83 = scmp.ne.s32.totalorder %s68, %s82
      %p84 = scmp.eq.s32.totalorder %s23, 0
      %p85 = por %p83, %p84
      %s86 = ssub.s32 %s25, %s32
      %p87 = scmp.eq.s32.totalorder %s86, 0
      %s89 = sadd.s32 %s88, 1
      %s90 = scalar_select %p87, %s88, %s89
      %p93 = pneg %p87
      %p94 = scmp.eq.s32.totalorder %s17, 1
      %p95 = por %p93, %p94
      %p96 = scmp.ne.s32.totalorder %s88, %s91
      %p97 = scmp.eq.s32.totalorder %s17, 0
      %p98 = por %p96, %p97
      %p99 = scmp.ne.s32.totalorder %s88, %s91
      %p100 = scmp.eq.s32.totalorder %s22, 1
      %p101 = por %p99, %p100
      %p102 = scmp.ne.s32.totalorder %s91, %s92
      %p103 = scmp.eq.s32.totalorder %s22, 0
      %p104 = por %p102, %p103
      %p105 = scmp.ne.s32.totalorder %s91, %s92
      %p106 = scmp.eq.s32.totalorder %s23, 1
      %p107 = por %p105, %p106
      %p109 = scmp.ne.s32.totalorder %s92, %s108
      %p110 = scmp.eq.s32.totalorder %s23, 0
      %p111 = por %p109, %p110
      %s112 = ssub.s32 %s24, %s36
      %p113 = scmp.eq.s32.totalorder %s112, 0
      %s115 = sadd.s32 %s114, 1
      %s116 = scalar_select %p113, %s114, %s115
      %p119 = pneg %p113
      %p120 = scmp.eq.s32.totalorder %s17, 1
      %p121 = por %p119, %p120
      %p122 = scmp.ne.s32.totalorder %s114, %s117
      %p123 = scmp.eq.s32.totalorder %s17, 0
      %p124 = por %p122, %p123
      %p125 = scmp.ne.s32.totalorder %s114, %s117
      %p126 = scmp.eq.s32.totalorder %s22, 1
      %p127 = por %p125, %p126
      %p128 = scmp.ne.s32.totalorder %s117, %s118
      %p129 = scmp.eq.s32.totalorder %s22, 0
      %p130 = por %p128, %p129
      %p131 = scmp.ne.s32.totalorder %s117, %s118
      %p132 = scmp.eq.s32.totalorder %s23, 1
      %p133 = por %p131, %p132
      %p135 = scmp.ne.s32.totalorder %s118, %s134
      %p136 = scmp.eq.s32.totalorder %s23, 0
      %p137 = por %p135, %p136
      %s138 = ssub.s32 %s24, %s36
      %s139 = ssub.s32 %s25, %s32
      %s140 = sor.u32 %s138, %s139
      %p141 = scmp.eq.s32.totalorder %s140, 0
      %s143 = sadd.s32 %s142, 1
      %s144 = scalar_select %p141, %s142, %s143
      %p147 = pneg %p141
      %p148 = scmp.eq.s32.totalorder %s17, 1
      %p149 = por %p147, %p148
      %p150 = scmp.ne.s32.totalorder %s142, %s145
      %p151 = scmp.eq.s32.totalorder %s17, 0
      %p152 = por %p150, %p151
      %p153 = scmp.ne.s32.totalorder %s142, %s145
      %p154 = scmp.eq.s32.totalorder %s22, 1
      %p155 = por %p153, %p154
      %p156 = scmp.ne.s32.totalorder %s145, %s146
      %p157 = scmp.eq.s32.totalorder %s22, 0
      %p158 = por %p156, %p157
      %p159 = scmp.ne.s32.totalorder %s145, %s146
      %p160 = scmp.eq.s32.totalorder %s23, 1
      %p161 = por %p159, %p160
      %p163 = scmp.ne.s32.totalorder %s146, %s162
      %p164 = scmp.eq.s32.totalorder %s23, 0
      %p165 = por %p163, %p164
      %p166 = scmp.le.s32.totalorder 1, %s17
      %p167 = scmp.lt.s32.totalorder %s17, 3
      %p168 = pnand %p166, %p167
      %p169 = pneg %p168
      // Predicated region
      $region9: #{tpu_custom_call.1} parent=5 // pred_check
        _
      $region10: #{tpu_custom_call.1} parent=5 // pred_check_branch
        %171 = sbr.rel (%p168) target = $region12
      $region11: #{tpu_custom_call.1} parent=5 // pred_region
        %s172 = ssub.s32 %s17, 1
        // Predicated region
        $region13: #{tpu_custom_call.1} parent=11 // pred_check
          %p173 = pneg %p78
        $region14: #{tpu_custom_call.1} parent=11 // pred_check_branch
          %175 = sbr.rel (%p173) target = $region16
        $region15: #{tpu_custom_call.1} parent=11 // pred_region
          _
        $region16: #{tpu_custom_call.1} parent=11 // pred_fallthru
          _
        // Predicated region
        $region17: #{tpu_custom_call.1} parent=11 // pred_check
          %p176 = pneg %p104
        $region18: #{tpu_custom_call.1} parent=11 // pred_check_branch
          %178 = sbr.rel (%p176) target = $region20
        $region19: #{tpu_custom_call.1} parent=11 // pred_region
          %s179 = smul.u32 2, %s27
          %s181 = ssub.s32 1792, 1792
          %182 = vsyncadd [#allocation6], %s181
          %s183 = smul.addr %s179, 128
          %s184 = scalar_lea.hbm %s2, %s183
          %s185 = sshll.u32 [#allocation5], 4
          %s186 = int_to_ptr.vmem [resolvable:$true] %s185
          %191 = dma.hbm_to_vmem [thread:$0]  %s184, 1792, %s186, [#allocation6], 256, 256, 16
        $region20: #{tpu_custom_call.1} parent=11 // pred_fallthru
          _
      $region12: #{tpu_custom_call.1} parent=5 // pred_fallthru
        _
      %p192 = scmp.lt.s32.totalorder %s17, 2
      // Predicated region
      $region21: #{tpu_custom_call.1} parent=5 // pred_check
        %p193 = pneg %p192
      $region22: #{tpu_custom_call.1} parent=5 // pred_check_branch
        %195 = sbr.rel (%p193) target = $region24
      $region23: #{tpu_custom_call.1} parent=5 // pred_region
        // Predicated region
        $region25: #{tpu_custom_call.1} parent=23 // pred_check
          %p196 = pneg %p51
        $region26: #{tpu_custom_call.1} parent=23 // pred_check_branch
          %198 = sbr.rel (%p196) target = $region28
        $region27: #{tpu_custom_call.1} parent=23 // pred_region
          %s199 = sand.u32 %s41, 1
          %s200 = scalar_lea.sflag [#allocation3], %s199
          %s201 = sand.u32 %s41, 1
          %s202 = smul.addr %s201, 8
          %s203 = scalar_lea.vmem [#allocation2], %s202
          %s204 = smul.u32 2, %s25
          %s206 = ssub.s32 128, 128
          %207 = vsyncadd %s200, %s206
          %s208 = smul.addr %s24, 2
          %s209 = sadd.s32 %s204, %s208
          %s210 = smul.addr %s209, 64
          %s211 = scalar_lea.hbm %s0, %s210
          %s213 = sshll.u32 %s203, 4
          %s214 = int_to_ptr.vmem [resolvable:$true] %s213
          %216 = dma.hbm_to_vmem [thread:$0]  %s211, 128, %s214, %s200
        $region28: #{tpu_custom_call.1} parent=23 // pred_fallthru
          _
        // Predicated region
        $region29: #{tpu_custom_call.1} parent=23 // pred_check
          %p217 = pneg %p124
        $region30: #{tpu_custom_call.1} parent=23 // pred_check_branch
          %219 = sbr.rel (%p217) target = $region32
        $region31: #{tpu_custom_call.1} parent=23 // pred_region
          %p220 = scmp.lt.s32.totalorder %s24, 1
          %s221 = scalar_select %p220, %s24, 1
          %s222 = smul.addr %s221, 8
          %s223 = scalar_lea.vmem %s3, %s222
        $region32: #{tpu_custom_call.1} parent=23 // pred_fallthru
          _
      $region24: #{tpu_custom_call.1} parent=5 // pred_fallthru
        _
      %p224 = scmp.le.s32.totalorder 1, %s17
      %p225 = scmp.lt.s32.totalorder %s17, 3
      %p226 = pnand %p224, %p225
      %p227 = pneg %p226
      // Predicated region
      $region33: #{tpu_custom_call.1} parent=5 // pred_check
        _
      $region34: #{tpu_custom_call.1} parent=5 // pred_check_branch
        %229 = sbr.rel (%p226) target = $region36
      $region35: #{tpu_custom_call.1} parent=5 // pred_region
        %s230 = ssub.s32 %s17, 1
        %s231 = sand.u32 %s44, 1
        %s232 = scalar_lea.sflag [#allocation3], %s231
        %s233 = sand.u32 %s44, 1
        %s234 = smul.addr %s233, 8
        %s235 = scalar_lea.vmem [#allocation2], %s234
        // Predicated region
        $region37: #{tpu_custom_call.1} parent=35 // pred_check
          %p236 = pneg %p57
        $region38: #{tpu_custom_call.1} parent=35 // pred_check_branch
          %238 = sbr.rel (%p236) target = $region40
        $region39: #{tpu_custom_call.1} parent=35 // pred_region
          %239 = dma.done %s232, 128
        $region40: #{tpu_custom_call.1} parent=35 // pred_fallthru
          _
        // Predicated region
        $region41: #{tpu_custom_call.1} parent=35 // pred_check
          %p240 = pneg %p104
        $region42: #{tpu_custom_call.1} parent=35 // pred_check_branch
          %242 = sbr.rel (%p240) target = $region44
        $region43: #{tpu_custom_call.1} parent=35 // pred_region
          %243 = dma.done [#allocation6], 1792
        $region44: #{tpu_custom_call.1} parent=35 // pred_fallthru
          _
        %s244 = sand.u32 %s44, 1
        %s245 = scalar_lea.sflag [#allocation3], %s244
        %s246 = sand.u32 %s44, 1
        %s247 = smul.addr %s246, 8
        %s248 = scalar_lea.vmem [#allocation2], %s247
        %p249 = pneg %p57
        %p250 = pneg %p54
        %p251 = pneg %p78
        %p252 = pneg %p75
        %p253 = pneg %p104
        %p254 = pneg %p101
        %p255 = scmp.lt.s32.totalorder %s26, 1
        %s256 = scalar_select %p255, %s26, 1
        %s257 = smul.addr %s256, 8
        %s258 = scalar_lea.vmem %s3, %s257
        %p259 = pneg %p130
        %p260 = pneg %p127
        %p261 = pneg %p158
        %p262 = pneg %p155
        %s263 = sand.u32 %s145, 1
        %s264 = scalar_lea.sflag [#allocation4], %s263
        %s265 = sand.u32 %s145, 1
        %s266 = smul.addr %s265, 16
        %s267 = scalar_lea.vmem [#allocation7], %s266
        %s268 = smul.u32 2, %s27
        %s269 = smul.u32 2, %s27
        %p270 = scmp.lt.s32.totalorder %s26, 1
        %s271 = scalar_select %p270, %s26, 1
        %s272 = smul.addr %s271, 8
        %s273 = scalar_lea.vmem %s3, %s272
        %s274 = smul.u32 2, %s27
        %v275 = vld [vmem:[%s1] sm:$0xff]
        %v276 = vld [vmem:[%s235] sm:$0xff]
        %v277 = vld [vmem:[%s273] sm:$0xff]
        %v278 = vld [vmem:[#allocation5] sm:$0xff]
        %v279 = vld [vmem:[#allocation5 + $0x8] sm:$0xff]
        %v280 = vld [vmem:[#allocation5 + $0x10] sm:$0xff]
        %v281 = vld [vmem:[#allocation5 + $0x18] sm:$0xff]
        %v282 = vld [vmem:[#allocation5 + $0x20] sm:$0xff]
        %v283 = vld [vmem:[#allocation5 + $0x28] sm:$0xff]
        %v284 = vld [vmem:[#allocation5 + $0x30] sm:$0xff]
        %v285 = vld [vmem:[#allocation5 + $0x38] sm:$0xff]
        %v286 = vld [vmem:[#allocation5 + $0x40] sm:$0xff]
        %v287 = vld [vmem:[#allocation5 + $0x48] sm:$0xff]
        %v288 = vld [vmem:[#allocation5 + $0x50] sm:$0xff]
        %v289 = vld [vmem:[#allocation5 + $0x58] sm:$0xff]
        %v290 = vld [vmem:[#allocation5 + $0x60] sm:$0x7]
        %v291 = vld [vmem:[#allocation5 + $0x68] sm:$0x7]
        %vm292 = vcmask 416768
        %v294 = vsel %vm292, %v277, 0
        %vm296 = vcmask 1042432
        %v298 = vsel %vm296, %v290, 0
        %v301 = vsel %vm296, %v291, 0
        %303 = vmatprep.subr.mxu0 %v279
        %304 = vmatpush1.msra.mxu0 %v278
        %305 = vmatprep.subr.mxu0 %v281
        %306 = vmatpush1.msra.mxu0 %v280
        %307 = vmatprep.subr.mxu0 %v283
        %308 = vmatpush1.msra.mxu0 %v282
        %309 = vmatprep.subr.mxu0 %v285
        %310 = vmatpush1.msra.mxu0 %v284
        %311 = vmatprep.subr.mxu0 %v287
        %312 = vmatpush1.msra.mxu0 %v286
        %313 = vmatprep.subr.mxu0 %v289
        %314 = vmatpush1.msra.mxu0 %v288
        %315 = vmatprep.subr.mxu0 %v301
        %316 = vmatpush1.msra.mxu0 %v298
        %317 = vmatprep.subr.mxu0 0.0
        %318 = vmatpush1.msra.mxu0 0.0
        %319 = vmatprep.subr.mxu0 0.0
        %320 = vmatpush1.msra.mxu0 0.0
        %321 = vmatprep.subr.mxu0 0.0
        %322 = vmatpush1.msra.mxu0 0.0
        %323 = vmatprep.subr.mxu0 0.0
        %324 = vmatpush1.msra.mxu0 0.0
        %325 = vmatprep.subr.mxu0 0.0
        %326 = vmatpush1.msra.mxu0 0.0
        %327 = vmatprep.subr.mxu0 0.0
        %328 = vmatpush1.msra.mxu0 0.0
        %329 = vmatprep.subr.mxu0 0.0
        %330 = vmatpush1.msra.mxu0 0.0
        %331 = vmatprep.subr.mxu0 0.0
        %332 = vmatpush1.msra.mxu0 0.0
        %333 = vmatprep.subr.mxu0 0.0
        %334 = vmatpush1.msra.mxu0 0.0
        %335 = vmatprep.subr.mxu0 0.0
        %336 = vmatpush1.msra.mxu0 0.0
        %337 = vmatprep.subr.mxu0 0.0
        %338 = vmatpush1.msra.mxu0 0.0
        %339 = vmatprep.subr.mxu0 0.0
        %340 = vmatpush1.msra.mxu0 0.0
        %341 = vmatprep.subr.mxu0 0.0
        %342 = vmatpush1.msra.mxu0 0.0
        %343 = vmatprep.subr.mxu0 0.0
        %344 = vmatpush1.msra.mxu0 0.0
        %345 = vmatprep.subr.mxu0 0.0
        %346 = vmatpush1.msra.mxu0 0.0
        %347 = vmatprep.subr.mxu0 0.0
        %348 = vmatpush1.msra.mxu0 0.0
        %349 = vmatprep.subr.mxu0 0.0
        %350 = vmatpush1.msra.mxu0 0.0
        %351 = vmatprep.subr.mxu0 0.0
        %352 = vmatpush1.msra.mxu0 0.0
        %353 = vmatprep.subr.mxu0 0.0
        %354 = vmatpush1.msra.mxu0 0.0
        %355 = vmatprep.subr.mxu0 0.0
        %356 = vmatpush1.msra.mxu0 0.0
        %357 = vmatprep.subr.mxu0 0.0
        %358 = vmatpush1.msra.mxu0 0.0
        %359 = vmatprep.subr.mxu0 0.0
        %360 = vmatpush1.msra.mxu0 0.0
        %361 = vmatprep.subr.mxu0 0.0
        %362 = vmatpush1.msra.mxu0 0.0
        %363 = vmatprep.subr.mxu0 0.0
        %364 = vmatpush1.msra.mxu0 0.0
        %365 = vmatprep.subr.mxu0 0.0
        %366 = vmatpush1.msra.mxu0 0.0
        %367 = vmatprep.mubr.f32.mxu0 0.0
        %368 = vmatmul.mubr.f32.gmra.mrb[0].mxu0 %v294
        %v369 = vpop.f32.mrb[0].mxu0
        %v370 = vadd.f32 0.0, %v369
        %v371 = vpop.f32.mrb[0].mxu0
        %v372 = vadd.f32 0.0, %v371
        %373 = vdwg.mxu0
        %v375 = vcombine.high %v276, %v276
        %vm376 = vcmask 31744
        %v378 = vsel %vm376, %v275, 0
        %vm380 = vcmask 1043456
        %v381 = vsel %vm380, %v276, 0
        %v383 = vsel %vm380, %v375, 0
        %385 = vmatprep.subr.mxu0 %v383
        %386 = vmatpush1.msra.mxu0 %v381
        %387 = vmatprep.subr.mxu0 0.0
        %388 = vmatpush1.msra.mxu0 0.0
        %389 = vmatprep.subr.mxu0 0.0
        %390 = vmatpush1.msra.mxu0 0.0
        %391 = vmatprep.subr.mxu0 0.0
        %392 = vmatpush1.msra.mxu0 0.0
        %393 = vmatprep.subr.mxu0 0.0
        %394 = vmatpush1.msra.mxu0 0.0
        %395 = vmatprep.subr.mxu0 0.0
        %396 = vmatpush1.msra.mxu0 0.0
        %397 = vmatprep.subr.mxu0 0.0
        %398 = vmatpush1.msra.mxu0 0.0
        %399 = vmatprep.subr.mxu0 0.0
        %400 = vmatpush1.msra.mxu0 0.0
        %401 = vmatprep.subr.mxu0 0.0
        %402 = vmatpush1.msra.mxu0 0.0
        %403 = vmatprep.subr.mxu0 0.0
        %404 = vmatpush1.msra.mxu0 0.0
        %405 = vmatprep.subr.mxu0 0.0
        %406 = vmatpush1.msra.mxu0 0.0
        %407 = vmatprep.subr.mxu0 0.0
        %408 = vmatpush1.msra.mxu0 0.0
        %409 = vmatprep.subr.mxu0 0.0
        %410 = vmatpush1.msra.mxu0 0.0
        %411 = vmatprep.subr.mxu0 0.0
        %412 = vmatpush1.msra.mxu0 0.0
        %413 = vmatprep.subr.mxu0 0.0
        %414 = vmatpush1.msra.mxu0 0.0
        %415 = vmatprep.subr.mxu0 0.0
        %416 = vmatpush1.msra.mxu0 0.0
        %417 = vmatprep.subr.mxu0 0.0
        %418 = vmatpush1.msra.mxu0 0.0
        %419 = vmatprep.subr.mxu0 0.0
        %420 = vmatpush1.msra.mxu0 0.0
        %421 = vmatprep.subr.mxu0 0.0
        %422 = vmatpush1.msra.mxu0 0.0
        %423 = vmatprep.subr.mxu0 0.0
        %424 = vmatpush1.msra.mxu0 0.0
        %425 = vmatprep.subr.mxu0 0.0
        %426 = vmatpush1.msra.mxu0 0.0
        %427 = vmatprep.subr.mxu0 0.0
        %428 = vmatpush1.msra.mxu0 0.0
        %429 = vmatprep.subr.mxu0 0.0
        %430 = vmatpush1.msra.mxu0 0.0
        %431 = vmatprep.subr.mxu0 0.0
        %432 = vmatpush1.msra.mxu0 0.0
        %433 = vmatprep.subr.mxu0 0.0
        %434 = vmatpush1.msra.mxu0 0.0
        %435 = vmatprep.subr.mxu0 0.0
        %436 = vmatpush1.msra.mxu0 0.0
        %437 = vmatprep.subr.mxu0 0.0
        %438 = vmatpush1.msra.mxu0 0.0
        %439 = vmatprep.subr.mxu0 0.0
        %440 = vmatpush1.msra.mxu0 0.0
        %441 = vmatprep.subr.mxu0 0.0
        %442 = vmatpush1.msra.mxu0 0.0
        %443 = vmatprep.subr.mxu0 0.0
        %444 = vmatpush1.msra.mxu0 0.0
        %445 = vmatprep.subr.mxu0 0.0
        %446 = vmatpush1.msra.mxu0 0.0
        %447 = vmatprep.subr.mxu0 0.0
        %448 = vmatpush1.msra.mxu0 0.0
        %449 = vmatprep.mubr.f32.mxu0 0.0
        %450 = vmatmul.mubr.f32.gmra.mrb[0].mxu0 %v378
        %v451 = vpop.f32.mrb[0].mxu0
        %v452 = vadd.f32 %v370, %v451
        %v453 = vpop.f32.mrb[0].mxu0
        %v454 = vadd.f32 %v372, %v453
        %455 = vdwg.mxu0
        %v456 = vmax.f32 %v452, 0.0
        %v457 = vmax.f32 %v454, 0.0
        %458 = vst [vmem:[%s267] sm:$0xff] %v456
        %459 = vst [vmem:[%s267 + $0x8] sm:$0xff] %v457
        %s460 = sand.u32 %s145, 1
        %s461 = scalar_lea.sflag [#allocation4], %s460
        %s462 = sand.u32 %s145, 1
        %s463 = smul.addr %s462, 16
        %s464 = scalar_lea.vmem [#allocation7], %s463
        // Predicated region
        $region45: #{tpu_custom_call.1} parent=35 // pred_check
          %p465 = pneg %p155
        $region46: #{tpu_custom_call.1} parent=35 // pred_check_branch
          %467 = sbr.rel (%p465) target = $region48
        $region47: #{tpu_custom_call.1} parent=35 // pred_region
          %s468 = smul.u32 2, %s27
          %s470 = ssub.s32 256, 256
          %471 = vsyncadd %s461, %s470
          %s472 = smul.addr %s26, 2
          %s473 = sadd.s32 %s468, %s472
          %s474 = smul.addr %s473, 128
          %s475 = scalar_lea.hbm %s4, %s474
          %s477 = sshll.u32 %s464, 4
          %s478 = int_to_ptr.vmem [resolvable:$true] %s477
          %480 = dma.vmem_to_hbm [thread:$0]  %s478, 256, %s475, %s461
        $region48: #{tpu_custom_call.1} parent=35 // pred_fallthru
          _
      $region36: #{tpu_custom_call.1} parent=5 // pred_fallthru
        _
      %p481 = scmp.le.s32.totalorder 2, %s17
      // Predicated region
      $region49: #{tpu_custom_call.1} parent=5 // pred_check
        %p482 = pneg %p481
      $region50: #{tpu_custom_call.1} parent=5 // pred_check_branch
        %484 = sbr.rel (%p482) target = $region52
      $region51: #{tpu_custom_call.1} parent=5 // pred_region
        %s485 = ssub.s32 %s17, 2
        // Predicated region
        $region53: #{tpu_custom_call.1} parent=51 // pred_check
          %p486 = pneg %p161
        $region54: #{tpu_custom_call.1} parent=51 // pred_check_branch
          %488 = sbr.rel (%p486) target = $region56
        $region55: #{tpu_custom_call.1} parent=51 // pred_region
          %s489 = sand.u32 %s146, 1
          %s490 = scalar_lea.sflag [#allocation4], %s489
          %s491 = sand.u32 %s146, 1
          %s492 = smul.addr %s491, 16
          %s493 = scalar_lea.vmem [#allocation7], %s492
          %494 = dma.done %s490, 256
        $region56: #{tpu_custom_call.1} parent=51 // pred_fallthru
          _
      $region52: #{tpu_custom_call.1} parent=5 // pred_fallthru
        _
    $region6: #{tpu_custom_call.1} parent=1 // loop_footer
      %s21 = sadd.s32 1, %s17
    $region7: #{tpu_custom_call.1} parent=1 // loop_footer_branch
      %16 = sbr.rel target = $region3
    $region8: #{tpu_custom_call.1} parent=1 // loop_exit
      _
    %495 = vsyncpa [#allocation3], 1
    %s496 = scalar_lea.sflag [#allocation3], 1
    %497 = vsyncpa %s496, 1
    %498 = vsyncpa [#allocation6], 1
    %499 = vsyncpa [#allocation4], 1
    %s500 = scalar_lea.sflag [#allocation4], 1
    %501 = vsyncpa %s500, 1

</llo_original>
